<compile_context>
chip_gen: v7x
topology: tpu7x:2x2x1
jax: 0.10.0
libtpu: 0.0.40
codegen_flags: <defaults>
</compile_context>

<pallas_src>
import functools

import jax
import jax.numpy as jnp
from jax.experimental import pallas as pl
from jax.experimental.pallas import tpu as pltpu


_VMEM = pl.BlockSpec(memory_space=pltpu.MemorySpace.VMEM)
_SMEM = pl.BlockSpec(memory_space=pltpu.MemorySpace.SMEM)

_NEG = -1e30          # mask value for non-edges
_LEAKY_SLOPE = 0.01   # F.leaky_relu default (as in dgl.EGATConv)


def egat_forward_kernel(sc_ref, nf_ref, ef_ref, adj_ref,
                        wp1_ref, wp2_ref, wfc_ref, bfc_ref,
                        out_ref, *, num_heads):
    nheads = num_heads
    n = nf_ref.shape[0]
    ef = ef_ref[...]                     # (N, N)   ef[v, u]  (dst-major)
    adjf = adj_ref[...]                  # (N, N)   adj[v, u] in {0, 1}
    mask = adjf > 0.0                    # hoisted once, reused by both layers
    # Head-stacked 0/1 mask (H*N, N) for the batched softmax of both layers.
    mask_stack = jnp.concatenate([adjf] * nheads, axis=0)

    def egat_layer(x, wp_ref, layer, apply_relu):
        # wp = [W_ni | W_nj | W_node] fused into one bias-free projection.
        out_nfeat = (wp_ref.shape[1] - 2 * nheads) // nheads
        base = layer * 3 * nheads

        proj = jnp.dot(x, wp_ref[...], preferred_element_type=jnp.float32)  # (N, 2H+H*Fn)
        f_ni_t = proj[:, :nheads].T                 # (H, N) src term, one row per head
        f_nj = proj[:, nheads:2 * nheads]           # (N, H) dst term
        h_src = proj[:, 2 * nheads:]                # (N, H*Fn) transformed src feats

        # Per-head logits, stacked into one (H*N, N) slab so the whole
        # edge-softmax below runs head-batched (one reduce/exp chain).
        logits = []
        for h in range(nheads):
            wf = sc_ref[0, base + 0 * nheads + h]   # fc_fij weight (scalar/head)
            at = sc_ref[0, base + 1 * nheads + h]   # attn (scalar, out_edge_feats=1)
            bs = sc_ref[0, base + 2 * nheads + h]   # bias (scalar/head)
            # score[v, u] = LeakyReLU(f_ni[u] + f_nj[v] + ef[v,u]*wf + bias)
            s = ef * wf + f_ni_t[h:h + 1, :] + (f_nj[:, h:h + 1] + bs)
            s = jnp.where(s > 0.0, s, _LEAKY_SLOPE * s)
            logits.append(jnp.where(mask, s * at, _NEG))   # mask BEFORE max (stability)
        e = jnp.concatenate(logits, axis=0)                       # (H*N, N)

        # Head-batched edge softmax over incoming edges (src axis = lanes).
        m = jnp.max(e, axis=1, keepdims=True)                     # (H*N, 1)
        p = jnp.exp(e - m) * mask_stack                           # non-edges -> 0
        den = jnp.sum(p, axis=1, keepdims=True)                   # (H*N, 1)
        # Zero-in-degree guard: den==0 -> a==0 -> h_out==0 (matches dgl sum-agg).
        a = p * pl.reciprocal(jnp.maximum(den, 1e-20), approx=True)

        # Weighted sum of transformed src features; one lane-dense concat.
        outs = [jnp.dot(a[h * n:(h + 1) * n, :],
                        h_src[:, h * out_nfeat:(h + 1) * out_nfeat],
                        preferred_element_type=jnp.float32)
                for h in range(nheads)]
        hout = jnp.concatenate(outs, axis=1)                      # (N, H*Fn)
        if apply_relu:
            hout = jnp.maximum(hout, 0.0)
        return hout

    # egat1 -> view(N, H*hid) -> relu (fused), then egat2 -> view(N, H*out).
    h1 = egat_layer(nf_ref[...], wp1_ref, layer=0, apply_relu=True)
    h2 = egat_layer(h1, wp2_ref, layer=1, apply_relu=False)

    # dgl.mean_nodes + nn.Linear; the 1/N mean scale is pre-folded into wfc.
    node_sum = jnp.sum(h2, axis=0, keepdims=True)                 # (1, H*out)
    out_ref[...] = (jnp.dot(node_sum, wfc_ref[...], preferred_element_type=jnp.float32)
                    + bfc_ref[...])


def _pack_scalars(params1, params2):
    # Single SMEM operand: (1, 2*3*H) = [L0: w_fij | attn | bias, L1: w_fij | attn | bias]
    return jnp.concatenate(
        [params1["w_fij"], params1["attn"], params1["bias"],
         params2["w_fij"], params2["attn"], params2["bias"]], axis=1).astype(jnp.float32)


def _pack_proj(params):
    # Fused bias-free projection weights: [W_ni | W_nj | W_node]  ->  (in, 2H + H*Fn)
    return jnp.concatenate([params["w_ni"], params["w_nj"], params["w_node"]],
                           axis=1).astype(jnp.float32)


@jax.jit
def egat_forward(node_feats, edge_feats, adj, params1, params2, w_fc, b_fc):
    num_heads = params1["attn"].shape[1]
    n = node_feats.shape[0]
    n_out = w_fc.shape[1]
    scalars = _pack_scalars(params1, params2)
    wp1 = _pack_proj(params1)
    wp2 = _pack_proj(params2)
    w_fc_mean = w_fc * (1.0 / n)     # fold dgl.mean_nodes scale into the fc weight
    kernel = functools.partial(egat_forward_kernel, num_heads=num_heads)
    return pl.pallas_call(
        kernel,
        out_shape=jax.ShapeDtypeStruct((1, n_out), jnp.float32),
        in_specs=[_SMEM,                        # merged per-head scalars (both layers)
                  _VMEM, _VMEM, _VMEM,          # nf, ef, adj
                  _VMEM, _VMEM,                 # fused projection weights (layer 1, 2)
                  _VMEM, _VMEM],                # fc: w (mean-folded), b
        out_specs=_VMEM,
    )(scalars, node_feats, edge_feats, adj, wp1, wp2, w_fc_mean, b_fc)


def init_egatconv_params(key, in_feats, out_node_feats, num_heads):
    ks = jax.random.split(key, 6)
    s = 0.1
    return {
        "w_node": s * jax.random.normal(ks[0], (in_feats, out_node_feats * num_heads), jnp.float32),
        "w_ni":   s * jax.random.normal(ks[1], (in_feats, num_heads), jnp.float32),
        "w_nj":   s * jax.random.normal(ks[2], (in_feats, num_heads), jnp.float32),
        "w_fij":  s * jax.random.normal(ks[3], (1, num_heads), jnp.float32),
        "attn":   s * jax.random.normal(ks[4], (1, num_heads), jnp.float32),
        "bias":   s * jax.random.normal(ks[5], (1, num_heads), jnp.float32),
    }


if __name__ == "__main__":
    # Config: N_hid (nodes)=16, frames=8, egat_hid=16, egat_heads=4, egat_out=8, N_out=4
    N, FRAMES, HID, HEADS, OUT, N_OUT = 16, 8, 16, 4, 8, 4

    key = jax.random.PRNGKey(0)
    k_nf, k_ef, k_p1, k_p2, k_fc = jax.random.split(key, 5)

    node_feats = jax.random.normal(k_nf, (N, FRAMES), jnp.float32)

    # Deterministic graph: ring + self-loops.  adj[v, u] = 1 means edge u -> v.
    idx = jnp.arange(N)
    adj = (jnp.zeros((N, N), jnp.float32)
           .at[idx, idx].set(1.0)
           .at[idx, (idx - 1) % N].set(1.0)
           .at[idx, (idx + 1) % N].set(1.0))
    edge_feats = jax.random.normal(k_ef, (N, N), jnp.float32) * adj

    params1 = init_egatconv_params(k_p1, FRAMES, HID, HEADS)
    params2 = init_egatconv_params(k_p2, HID * HEADS, OUT, HEADS)
    w_fc = 0.1 * jax.random.normal(k_fc, (OUT * HEADS, N_OUT), jnp.float32)
    b_fc = jnp.zeros((1, N_OUT), jnp.float32)

    out = egat_forward(node_feats, edge_feats, adj, params1, params2, w_fc, b_fc)
    out = jax.block_until_ready(out)
    assert out.shape == (1, N_OUT)
    assert bool(jnp.all(jnp.isfinite(out)))
    print("KERNEL_OK")
</pallas_src>

<mosaic_0001>
module attributes {stable_mosaic.version = 11 : i64} {
  func.func @egat_forward_kernel(%arg0: memref<1x24xf32, #tpu.memory_space<smem>>, %arg1: memref<16x8xf32, #tpu.memory_space<vmem>>, %arg2: memref<16x16xf32, #tpu.memory_space<vmem>>, %arg3: memref<16x16xf32, #tpu.memory_space<vmem>>, %arg4: memref<8x72xf32, #tpu.memory_space<vmem>>, %arg5: memref<64x40xf32, #tpu.memory_space<vmem>>, %arg6: memref<32x4xf32, #tpu.memory_space<vmem>>, %arg7: memref<1x4xf32, #tpu.memory_space<vmem>>, %arg8: memref<1x4xf32, #tpu.memory_space<vmem>>) attributes {dimension_semantics = [], scalar_prefetch = 0 : i64, scratch_operands = 0 : i64, tpu.core_type = #tpu.core_type<tc>} {
    %c0 = arith.constant 0 : index
    %c0_0 = arith.constant 0 : index
    %0 = vector.load %arg2[%c0, %c0_0] : memref<16x16xf32, #tpu.memory_space<vmem>>, vector<16x16xf32>
    %c0_1 = arith.constant 0 : index
    %c0_2 = arith.constant 0 : index
    %1 = vector.load %arg3[%c0_1, %c0_2] : memref<16x16xf32, #tpu.memory_space<vmem>>, vector<16x16xf32>
    %cst = arith.constant 0.000000e+00 : f32
    %2 = vector.broadcast %cst : f32 to vector<16x16xf32>
    %3 = arith.cmpf ogt, %1, %2 : vector<16x16xf32>
    %4 = tpu.concatenate %1, %1, %1, %1 in 0 : vector<16x16xf32>, vector<16x16xf32>, vector<16x16xf32>, vector<16x16xf32> -> vector<64x16xf32>
    %c0_3 = arith.constant 0 : index
    %c0_4 = arith.constant 0 : index
    %5 = vector.load %arg1[%c0_3, %c0_4] : memref<16x8xf32, #tpu.memory_space<vmem>>, vector<16x8xf32>
    %c0_5 = arith.constant 0 : index
    %c0_6 = arith.constant 0 : index
    %6 = vector.load %arg4[%c0_5, %c0_6] : memref<8x72xf32, #tpu.memory_space<vmem>>, vector<8x72xf32>
    %cst_7 = arith.constant dense<0.000000e+00> : vector<16x72xf32>
    %7 = tpu.matmul %5, %6, %cst_7 {dimension_numbers = #tpu.dot_dimension_numbers<[1], [0], [0], [1], [0, 0, 1, 1], [], []>} : vector<16x8xf32>, vector<8x72xf32>, vector<16x72xf32> -> vector<16x72xf32>
    %8 = vector.extract_strided_slice %7 {offsets = [0, 0], sizes = [16, 4], strides = [1, 1]} : vector<16x72xf32> to vector<16x4xf32>
    %9 = tpu.transpose %8, [1, 0] : vector<16x4xf32> -> vector<4x16xf32>
    %10 = vector.extract_strided_slice %7 {offsets = [0, 4], sizes = [16, 4], strides = [1, 1]} : vector<16x72xf32> to vector<16x4xf32>
    %11 = vector.extract_strided_slice %7 {offsets = [0, 8], sizes = [16, 64], strides = [1, 1]} : vector<16x72xf32> to vector<16x64xf32>
    %c0_8 = arith.constant 0 : index
    %c0_9 = arith.constant 0 : index
    %12 = memref.load %arg0[%c0_8, %c0_9] : memref<1x24xf32, #tpu.memory_space<smem>>
    %c0_10 = arith.constant 0 : index
    %c4 = arith.constant 4 : index
    %13 = memref.load %arg0[%c0_10, %c4] : memref<1x24xf32, #tpu.memory_space<smem>>
    %c0_11 = arith.constant 0 : index
    %c8 = arith.constant 8 : index
    %14 = memref.load %arg0[%c0_11, %c8] : memref<1x24xf32, #tpu.memory_space<smem>>
    %15 = vector.broadcast %12 : f32 to vector<16x16xf32>
    %16 = arith.mulf %0, %15 : vector<16x16xf32>
    %17 = vector.extract_strided_slice %9 {offsets = [0, 0], sizes = [1, 16], strides = [1, 1]} : vector<4x16xf32> to vector<1x16xf32>
    %18 = vector.broadcast %17 : vector<1x16xf32> to vector<16x16xf32>
    %19 = arith.addf %16, %18 : vector<16x16xf32>
    %20 = vector.extract_strided_slice %10 {offsets = [0, 0], sizes = [16, 1], strides = [1, 1]} : vector<16x4xf32> to vector<16x1xf32>
    %21 = vector.broadcast %14 : f32 to vector<16x1xf32>
    %22 = arith.addf %20, %21 : vector<16x1xf32>
    %23 = vector.broadcast %22 : vector<16x1xf32> to vector<16x16xf32>
    %24 = arith.addf %19, %23 : vector<16x16xf32>
    %cst_12 = arith.constant 0.000000e+00 : f32
    %25 = vector.broadcast %cst_12 : f32 to vector<16x16xf32>
    %26 = arith.cmpf ogt, %24, %25 : vector<16x16xf32>
    %cst_13 = arith.constant 0.00999999977 : f32
    %27 = vector.broadcast %cst_13 : f32 to vector<16x16xf32>
    %28 = arith.mulf %27, %24 : vector<16x16xf32>
    %29 = arith.select %26, %24, %28 : vector<16x16xi1>, vector<16x16xf32>
    %30 = vector.broadcast %13 : f32 to vector<16x16xf32>
    %31 = arith.mulf %29, %30 : vector<16x16xf32>
    %cst_14 = arith.constant -1.000000e+30 : f32
    %32 = vector.broadcast %cst_14 : f32 to vector<16x16xf32>
    %33 = arith.select %3, %31, %32 : vector<16x16xi1>, vector<16x16xf32>
    %c0_15 = arith.constant 0 : index
    %c1 = arith.constant 1 : index
    %34 = memref.load %arg0[%c0_15, %c1] : memref<1x24xf32, #tpu.memory_space<smem>>
    %c0_16 = arith.constant 0 : index
    %c5 = arith.constant 5 : index
    %35 = memref.load %arg0[%c0_16, %c5] : memref<1x24xf32, #tpu.memory_space<smem>>
    %c0_17 = arith.constant 0 : index
    %c9 = arith.constant 9 : index
    %36 = memref.load %arg0[%c0_17, %c9] : memref<1x24xf32, #tpu.memory_space<smem>>
    %37 = vector.broadcast %34 : f32 to vector<16x16xf32>
    %38 = arith.mulf %0, %37 : vector<16x16xf32>
    %39 = vector.extract_strided_slice %9 {offsets = [1, 0], sizes = [1, 16], strides = [1, 1]} : vector<4x16xf32> to vector<1x16xf32>
    %40 = vector.broadcast %39 : vector<1x16xf32> to vector<16x16xf32>
    %41 = arith.addf %38, %40 : vector<16x16xf32>
    %42 = vector.extract_strided_slice %10 {offsets = [0, 1], sizes = [16, 1], strides = [1, 1]} : vector<16x4xf32> to vector<16x1xf32>
    %43 = vector.broadcast %36 : f32 to vector<16x1xf32>
    %44 = arith.addf %42, %43 : vector<16x1xf32>
    %45 = vector.broadcast %44 : vector<16x1xf32> to vector<16x16xf32>
    %46 = arith.addf %41, %45 : vector<16x16xf32>
    %cst_18 = arith.constant 0.000000e+00 : f32
    %47 = vector.broadcast %cst_18 : f32 to vector<16x16xf32>
    %48 = arith.cmpf ogt, %46, %47 : vector<16x16xf32>
    %cst_19 = arith.constant 0.00999999977 : f32
    %49 = vector.broadcast %cst_19 : f32 to vector<16x16xf32>
    %50 = arith.mulf %49, %46 : vector<16x16xf32>
    %51 = arith.select %48, %46, %50 : vector<16x16xi1>, vector<16x16xf32>
    %52 = vector.broadcast %35 : f32 to vector<16x16xf32>
    %53 = arith.mulf %51, %52 : vector<16x16xf32>
    %cst_20 = arith.constant -1.000000e+30 : f32
    %54 = vector.broadcast %cst_20 : f32 to vector<16x16xf32>
    %55 = arith.select %3, %53, %54 : vector<16x16xi1>, vector<16x16xf32>
    %c0_21 = arith.constant 0 : index
    %c2 = arith.constant 2 : index
    %56 = memref.load %arg0[%c0_21, %c2] : memref<1x24xf32, #tpu.memory_space<smem>>
    %c0_22 = arith.constant 0 : index
    %c6 = arith.constant 6 : index
    %57 = memref.load %arg0[%c0_22, %c6] : memref<1x24xf32, #tpu.memory_space<smem>>
    %c0_23 = arith.constant 0 : index
    %c10 = arith.constant 10 : index
    %58 = memref.load %arg0[%c0_23, %c10] : memref<1x24xf32, #tpu.memory_space<smem>>
    %59 = vector.broadcast %56 : f32 to vector<16x16xf32>
    %60 = arith.mulf %0, %59 : vector<16x16xf32>
    %61 = vector.extract_strided_slice %9 {offsets = [2, 0], sizes = [1, 16], strides = [1, 1]} : vector<4x16xf32> to vector<1x16xf32>
    %62 = vector.broadcast %61 : vector<1x16xf32> to vector<16x16xf32>
    %63 = arith.addf %60, %62 : vector<16x16xf32>
    %64 = vector.extract_strided_slice %10 {offsets = [0, 2], sizes = [16, 1], strides = [1, 1]} : vector<16x4xf32> to vector<16x1xf32>
    %65 = vector.broadcast %58 : f32 to vector<16x1xf32>
    %66 = arith.addf %64, %65 : vector<16x1xf32>
    %67 = vector.broadcast %66 : vector<16x1xf32> to vector<16x16xf32>
    %68 = arith.addf %63, %67 : vector<16x16xf32>
    %cst_24 = arith.constant 0.000000e+00 : f32
    %69 = vector.broadcast %cst_24 : f32 to vector<16x16xf32>
    %70 = arith.cmpf ogt, %68, %69 : vector<16x16xf32>
    %cst_25 = arith.constant 0.00999999977 : f32
    %71 = vector.broadcast %cst_25 : f32 to vector<16x16xf32>
    %72 = arith.mulf %71, %68 : vector<16x16xf32>
    %73 = arith.select %70, %68, %72 : vector<16x16xi1>, vector<16x16xf32>
    %74 = vector.broadcast %57 : f32 to vector<16x16xf32>
    %75 = arith.mulf %73, %74 : vector<16x16xf32>
    %cst_26 = arith.constant -1.000000e+30 : f32
    %76 = vector.broadcast %cst_26 : f32 to vector<16x16xf32>
    %77 = arith.select %3, %75, %76 : vector<16x16xi1>, vector<16x16xf32>
    %c0_27 = arith.constant 0 : index
    %c3 = arith.constant 3 : index
    %78 = memref.load %arg0[%c0_27, %c3] : memref<1x24xf32, #tpu.memory_space<smem>>
    %c0_28 = arith.constant 0 : index
    %c7 = arith.constant 7 : index
    %79 = memref.load %arg0[%c0_28, %c7] : memref<1x24xf32, #tpu.memory_space<smem>>
    %c0_29 = arith.constant 0 : index
    %c11 = arith.constant 11 : index
    %80 = memref.load %arg0[%c0_29, %c11] : memref<1x24xf32, #tpu.memory_space<smem>>
    %81 = vector.broadcast %78 : f32 to vector<16x16xf32>
    %82 = arith.mulf %0, %81 : vector<16x16xf32>
    %83 = vector.extract_strided_slice %9 {offsets = [3, 0], sizes = [1, 16], strides = [1, 1]} : vector<4x16xf32> to vector<1x16xf32>
    %84 = vector.broadcast %83 : vector<1x16xf32> to vector<16x16xf32>
    %85 = arith.addf %82, %84 : vector<16x16xf32>
    %86 = vector.extract_strided_slice %10 {offsets = [0, 3], sizes = [16, 1], strides = [1, 1]} : vector<16x4xf32> to vector<16x1xf32>
    %87 = vector.broadcast %80 : f32 to vector<16x1xf32>
    %88 = arith.addf %86, %87 : vector<16x1xf32>
    %89 = vector.broadcast %88 : vector<16x1xf32> to vector<16x16xf32>
    %90 = arith.addf %85, %89 : vector<16x16xf32>
    %cst_30 = arith.constant 0.000000e+00 : f32
    %91 = vector.broadcast %cst_30 : f32 to vector<16x16xf32>
    %92 = arith.cmpf ogt, %90, %91 : vector<16x16xf32>
    %cst_31 = arith.constant 0.00999999977 : f32
    %93 = vector.broadcast %cst_31 : f32 to vector<16x16xf32>
    %94 = arith.mulf %93, %90 : vector<16x16xf32>
    %95 = arith.select %92, %90, %94 : vector<16x16xi1>, vector<16x16xf32>
    %96 = vector.broadcast %79 : f32 to vector<16x16xf32>
    %97 = arith.mulf %95, %96 : vector<16x16xf32>
    %cst_32 = arith.constant -1.000000e+30 : f32
    %98 = vector.broadcast %cst_32 : f32 to vector<16x16xf32>
    %99 = arith.select %3, %97, %98 : vector<16x16xi1>, vector<16x16xf32>
    %100 = tpu.concatenate %33, %55, %77, %99 in 0 : vector<16x16xf32>, vector<16x16xf32>, vector<16x16xf32>, vector<16x16xf32> -> vector<64x16xf32>
    %cst_33 = arith.constant dense<0xFF800000> : vector<64xf32>
    %101 = vector.multi_reduction <maximumf>, %100, %cst_33 [1] : vector<64x16xf32> to vector<64xf32>
    %102 = vector.shape_cast %101 : vector<64xf32> to vector<64x1xf32>
    %103 = vector.broadcast %102 : vector<64x1xf32> to vector<64x16xf32>
    %104 = arith.subf %100, %103 : vector<64x16xf32>
    %105 = math.exp %104 : vector<64x16xf32>
    %106 = arith.mulf %105, %4 : vector<64x16xf32>
    %cst_34 = arith.constant dense<0.000000e+00> : vector<64xf32>
    %107 = vector.multi_reduction <add>, %106, %cst_34 [1] : vector<64x16xf32> to vector<64xf32>
    %108 = vector.shape_cast %107 : vector<64xf32> to vector<64x1xf32>
    %cst_35 = arith.constant 9.99999968E-21 : f32
    %109 = vector.broadcast %cst_35 : f32 to vector<64x1xf32>
    %110 = arith.maximumf %108, %109 : vector<64x1xf32>
    %111 = tpu.reciprocal %110 {approx = true} : vector<64x1xf32> -> vector<64x1xf32>
    %112 = vector.broadcast %111 : vector<64x1xf32> to vector<64x16xf32>
    %113 = arith.mulf %106, %112 : vector<64x16xf32>
    %114 = vector.extract_strided_slice %113 {offsets = [0, 0], sizes = [16, 16], strides = [1, 1]} : vector<64x16xf32> to vector<16x16xf32>
    %115 = vector.extract_strided_slice %11 {offsets = [0, 0], sizes = [16, 16], strides = [1, 1]} : vector<16x64xf32> to vector<16x16xf32>
    %cst_36 = arith.constant dense<0.000000e+00> : vector<16x16xf32>
    %116 = tpu.matmul %114, %115, %cst_36 {dimension_numbers = #tpu.dot_dimension_numbers<[1], [0], [0], [1], [0, 0, 1, 1], [], []>} : vector<16x16xf32>, vector<16x16xf32>, vector<16x16xf32> -> vector<16x16xf32>
    %117 = vector.extract_strided_slice %113 {offsets = [16, 0], sizes = [16, 16], strides = [1, 1]} : vector<64x16xf32> to vector<16x16xf32>
    %118 = vector.extract_strided_slice %11 {offsets = [0, 16], sizes = [16, 16], strides = [1, 1]} : vector<16x64xf32> to vector<16x16xf32>
    %cst_37 = arith.constant dense<0.000000e+00> : vector<16x16xf32>
    %119 = tpu.matmul %117, %118, %cst_37 {dimension_numbers = #tpu.dot_dimension_numbers<[1], [0], [0], [1], [0, 0, 1, 1], [], []>} : vector<16x16xf32>, vector<16x16xf32>, vector<16x16xf32> -> vector<16x16xf32>
    %120 = vector.extract_strided_slice %113 {offsets = [32, 0], sizes = [16, 16], strides = [1, 1]} : vector<64x16xf32> to vector<16x16xf32>
    %121 = vector.extract_strided_slice %11 {offsets = [0, 32], sizes = [16, 16], strides = [1, 1]} : vector<16x64xf32> to vector<16x16xf32>
    %cst_38 = arith.constant dense<0.000000e+00> : vector<16x16xf32>
    %122 = tpu.matmul %120, %121, %cst_38 {dimension_numbers = #tpu.dot_dimension_numbers<[1], [0], [0], [1], [0, 0, 1, 1], [], []>} : vector<16x16xf32>, vector<16x16xf32>, vector<16x16xf32> -> vector<16x16xf32>
    %123 = vector.extract_strided_slice %113 {offsets = [48, 0], sizes = [16, 16], strides = [1, 1]} : vector<64x16xf32> to vector<16x16xf32>
    %124 = vector.extract_strided_slice %11 {offsets = [0, 48], sizes = [16, 16], strides = [1, 1]} : vector<16x64xf32> to vector<16x16xf32>
    %cst_39 = arith.constant dense<0.000000e+00> : vector<16x16xf32>
    %125 = tpu.matmul %123, %124, %cst_39 {dimension_numbers = #tpu.dot_dimension_numbers<[1], [0], [0], [1], [0, 0, 1, 1], [], []>} : vector<16x16xf32>, vector<16x16xf32>, vector<16x16xf32> -> vector<16x16xf32>
    %126 = tpu.concatenate %116, %119, %122, %125 in 1 : vector<16x16xf32>, vector<16x16xf32>, vector<16x16xf32>, vector<16x16xf32> -> vector<16x64xf32>
    %cst_40 = arith.constant 0.000000e+00 : f32
    %127 = vector.broadcast %cst_40 : f32 to vector<16x64xf32>
    %128 = arith.maximumf %126, %127 : vector<16x64xf32>
    %c0_41 = arith.constant 0 : index
    %c0_42 = arith.constant 0 : index
    %129 = vector.load %arg5[%c0_41, %c0_42] : memref<64x40xf32, #tpu.memory_space<vmem>>, vector<64x40xf32>
    %cst_43 = arith.constant dense<0.000000e+00> : vector<16x40xf32>
    %130 = tpu.matmul %128, %129, %cst_43 {dimension_numbers = #tpu.dot_dimension_numbers<[1], [0], [0], [1], [0, 0, 1, 1], [], []>} : vector<16x64xf32>, vector<64x40xf32>, vector<16x40xf32> -> vector<16x40xf32>
    %131 = vector.extract_strided_slice %130 {offsets = [0, 0], sizes = [16, 4], strides = [1, 1]} : vector<16x40xf32> to vector<16x4xf32>
    %132 = tpu.transpose %131, [1, 0] : vector<16x4xf32> -> vector<4x16xf32>
    %133 = vector.extract_strided_slice %130 {offsets = [0, 4], sizes = [16, 4], strides = [1, 1]} : vector<16x40xf32> to vector<16x4xf32>
    %134 = vector.extract_strided_slice %130 {offsets = [0, 8], sizes = [16, 32], strides = [1, 1]} : vector<16x40xf32> to vector<16x32xf32>
    %c0_44 = arith.constant 0 : index
    %c12 = arith.constant 12 : index
    %135 = memref.load %arg0[%c0_44, %c12] : memref<1x24xf32, #tpu.memory_space<smem>>
    %c0_45 = arith.constant 0 : index
    %c16 = arith.constant 16 : index
    %136 = memref.load %arg0[%c0_45, %c16] : memref<1x24xf32, #tpu.memory_space<smem>>
    %c0_46 = arith.constant 0 : index
    %c20 = arith.constant 20 : index
    %137 = memref.load %arg0[%c0_46, %c20] : memref<1x24xf32, #tpu.memory_space<smem>>
    %138 = vector.broadcast %135 : f32 to vector<16x16xf32>
    %139 = arith.mulf %0, %138 : vector<16x16xf32>
    %140 = vector.extract_strided_slice %132 {offsets = [0, 0], sizes = [1, 16], strides = [1, 1]} : vector<4x16xf32> to vector<1x16xf32>
    %141 = vector.broadcast %140 : vector<1x16xf32> to vector<16x16xf32>
    %142 = arith.addf %139, %141 : vector<16x16xf32>
    %143 = vector.extract_strided_slice %133 {offsets = [0, 0], sizes = [16, 1], strides = [1, 1]} : vector<16x4xf32> to vector<16x1xf32>
    %144 = vector.broadcast %137 : f32 to vector<16x1xf32>
    %145 = arith.addf %143, %144 : vector<16x1xf32>
    %146 = vector.broadcast %145 : vector<16x1xf32> to vector<16x16xf32>
    %147 = arith.addf %142, %146 : vector<16x16xf32>
    %cst_47 = arith.constant 0.000000e+00 : f32
    %148 = vector.broadcast %cst_47 : f32 to vector<16x16xf32>
    %149 = arith.cmpf ogt, %147, %148 : vector<16x16xf32>
    %cst_48 = arith.constant 0.00999999977 : f32
    %150 = vector.broadcast %cst_48 : f32 to vector<16x16xf32>
    %151 = arith.mulf %150, %147 : vector<16x16xf32>
    %152 = arith.select %149, %147, %151 : vector<16x16xi1>, vector<16x16xf32>
    %153 = vector.broadcast %136 : f32 to vector<16x16xf32>
    %154 = arith.mulf %152, %153 : vector<16x16xf32>
    %cst_49 = arith.constant -1.000000e+30 : f32
    %155 = vector.broadcast %cst_49 : f32 to vector<16x16xf32>
    %156 = arith.select %3, %154, %155 : vector<16x16xi1>, vector<16x16xf32>
    %c0_50 = arith.constant 0 : index
    %c13 = arith.constant 13 : index
    %157 = memref.load %arg0[%c0_50, %c13] : memref<1x24xf32, #tpu.memory_space<smem>>
    %c0_51 = arith.constant 0 : index
    %c17 = arith.constant 17 : index
    %158 = memref.load %arg0[%c0_51, %c17] : memref<1x24xf32, #tpu.memory_space<smem>>
    %c0_52 = arith.constant 0 : index
    %c21 = arith.constant 21 : index
    %159 = memref.load %arg0[%c0_52, %c21] : memref<1x24xf32, #tpu.memory_space<smem>>
    %160 = vector.broadcast %157 : f32 to vector<16x16xf32>
    %161 = arith.mulf %0, %160 : vector<16x16xf32>
    %162 = vector.extract_strided_slice %132 {offsets = [1, 0], sizes = [1, 16], strides = [1, 1]} : vector<4x16xf32> to vector<1x16xf32>
    %163 = vector.broadcast %162 : vector<1x16xf32> to vector<16x16xf32>
    %164 = arith.addf %161, %163 : vector<16x16xf32>
    %165 = vector.extract_strided_slice %133 {offsets = [0, 1], sizes = [16, 1], strides = [1, 1]} : vector<16x4xf32> to vector<16x1xf32>
    %166 = vector.broadcast %159 : f32 to vector<16x1xf32>
    %167 = arith.addf %165, %166 : vector<16x1xf32>
    %168 = vector.broadcast %167 : vector<16x1xf32> to vector<16x16xf32>
    %169 = arith.addf %164, %168 : vector<16x16xf32>
    %cst_53 = arith.constant 0.000000e+00 : f32
    %170 = vector.broadcast %cst_53 : f32 to vector<16x16xf32>
    %171 = arith.cmpf ogt, %169, %170 : vector<16x16xf32>
    %cst_54 = arith.constant 0.00999999977 : f32
    %172 = vector.broadcast %cst_54 : f32 to vector<16x16xf32>
    %173 = arith.mulf %172, %169 : vector<16x16xf32>
    %174 = arith.select %171, %169, %173 : vector<16x16xi1>, vector<16x16xf32>
    %175 = vector.broadcast %158 : f32 to vector<16x16xf32>
    %176 = arith.mulf %174, %175 : vector<16x16xf32>
    %cst_55 = arith.constant -1.000000e+30 : f32
    %177 = vector.broadcast %cst_55 : f32 to vector<16x16xf32>
    %178 = arith.select %3, %176, %177 : vector<16x16xi1>, vector<16x16xf32>
    %c0_56 = arith.constant 0 : index
    %c14 = arith.constant 14 : index
    %179 = memref.load %arg0[%c0_56, %c14] : memref<1x24xf32, #tpu.memory_space<smem>>
    %c0_57 = arith.constant 0 : index
    %c18 = arith.constant 18 : index
    %180 = memref.load %arg0[%c0_57, %c18] : memref<1x24xf32, #tpu.memory_space<smem>>
    %c0_58 = arith.constant 0 : index
    %c22 = arith.constant 22 : index
    %181 = memref.load %arg0[%c0_58, %c22] : memref<1x24xf32, #tpu.memory_space<smem>>
    %182 = vector.broadcast %179 : f32 to vector<16x16xf32>
    %183 = arith.mulf %0, %182 : vector<16x16xf32>
    %184 = vector.extract_strided_slice %132 {offsets = [2, 0], sizes = [1, 16], strides = [1, 1]} : vector<4x16xf32> to vector<1x16xf32>
    %185 = vector.broadcast %184 : vector<1x16xf32> to vector<16x16xf32>
    %186 = arith.addf %183, %185 : vector<16x16xf32>
    %187 = vector.extract_strided_slice %133 {offsets = [0, 2], sizes = [16, 1], strides = [1, 1]} : vector<16x4xf32> to vector<16x1xf32>
    %188 = vector.broadcast %181 : f32 to vector<16x1xf32>
    %189 = arith.addf %187, %188 : vector<16x1xf32>
    %190 = vector.broadcast %189 : vector<16x1xf32> to vector<16x16xf32>
    %191 = arith.addf %186, %190 : vector<16x16xf32>
    %cst_59 = arith.constant 0.000000e+00 : f32
    %192 = vector.broadcast %cst_59 : f32 to vector<16x16xf32>
    %193 = arith.cmpf ogt, %191, %192 : vector<16x16xf32>
    %cst_60 = arith.constant 0.00999999977 : f32
    %194 = vector.broadcast %cst_60 : f32 to vector<16x16xf32>
    %195 = arith.mulf %194, %191 : vector<16x16xf32>
    %196 = arith.select %193, %191, %195 : vector<16x16xi1>, vector<16x16xf32>
    %197 = vector.broadcast %180 : f32 to vector<16x16xf32>
    %198 = arith.mulf %196, %197 : vector<16x16xf32>
    %cst_61 = arith.constant -1.000000e+30 : f32
    %199 = vector.broadcast %cst_61 : f32 to vector<16x16xf32>
    %200 = arith.select %3, %198, %199 : vector<16x16xi1>, vector<16x16xf32>
    %c0_62 = arith.constant 0 : index
    %c15 = arith.constant 15 : index
    %201 = memref.load %arg0[%c0_62, %c15] : memref<1x24xf32, #tpu.memory_space<smem>>
    %c0_63 = arith.constant 0 : index
    %c19 = arith.constant 19 : index
    %202 = memref.load %arg0[%c0_63, %c19] : memref<1x24xf32, #tpu.memory_space<smem>>
    %c0_64 = arith.constant 0 : index
    %c23 = arith.constant 23 : index
    %203 = memref.load %arg0[%c0_64, %c23] : memref<1x24xf32, #tpu.memory_space<smem>>
    %204 = vector.broadcast %201 : f32 to vector<16x16xf32>
    %205 = arith.mulf %0, %204 : vector<16x16xf32>
    %206 = vector.extract_strided_slice %132 {offsets = [3, 0], sizes = [1, 16], strides = [1, 1]} : vector<4x16xf32> to vector<1x16xf32>
    %207 = vector.broadcast %206 : vector<1x16xf32> to vector<16x16xf32>
    %208 = arith.addf %205, %207 : vector<16x16xf32>
    %209 = vector.extract_strided_slice %133 {offsets = [0, 3], sizes = [16, 1], strides = [1, 1]} : vector<16x4xf32> to vector<16x1xf32>
    %210 = vector.broadcast %203 : f32 to vector<16x1xf32>
    %211 = arith.addf %209, %210 : vector<16x1xf32>
    %212 = vector.broadcast %211 : vector<16x1xf32> to vector<16x16xf32>
    %213 = arith.addf %208, %212 : vector<16x16xf32>
    %cst_65 = arith.constant 0.000000e+00 : f32
    %214 = vector.broadcast %cst_65 : f32 to vector<16x16xf32>
    %215 = arith.cmpf ogt, %213, %214 : vector<16x16xf32>
    %cst_66 = arith.constant 0.00999999977 : f32
    %216 = vector.broadcast %cst_66 : f32 to vector<16x16xf32>
    %217 = arith.mulf %216, %213 : vector<16x16xf32>
    %218 = arith.select %215, %213, %217 : vector<16x16xi1>, vector<16x16xf32>
    %219 = vector.broadcast %202 : f32 to vector<16x16xf32>
    %220 = arith.mulf %218, %219 : vector<16x16xf32>
    %cst_67 = arith.constant -1.000000e+30 : f32
    %221 = vector.broadcast %cst_67 : f32 to vector<16x16xf32>
    %222 = arith.select %3, %220, %221 : vector<16x16xi1>, vector<16x16xf32>
    %223 = tpu.concatenate %156, %178, %200, %222 in 0 : vector<16x16xf32>, vector<16x16xf32>, vector<16x16xf32>, vector<16x16xf32> -> vector<64x16xf32>
    %cst_68 = arith.constant dense<0xFF800000> : vector<64xf32>
    %224 = vector.multi_reduction <maximumf>, %223, %cst_68 [1] : vector<64x16xf32> to vector<64xf32>
    %225 = vector.shape_cast %224 : vector<64xf32> to vector<64x1xf32>
    %226 = vector.broadcast %225 : vector<64x1xf32> to vector<64x16xf32>
    %227 = arith.subf %223, %226 : vector<64x16xf32>
    %228 = math.exp %227 : vector<64x16xf32>
    %229 = arith.mulf %228, %4 : vector<64x16xf32>
    %cst_69 = arith.constant dense<0.000000e+00> : vector<64xf32>
    %230 = vector.multi_reduction <add>, %229, %cst_69 [1] : vector<64x16xf32> to vector<64xf32>
    %231 = vector.shape_cast %230 : vector<64xf32> to vector<64x1xf32>
    %cst_70 = arith.constant 9.99999968E-21 : f32
    %232 = vector.broadcast %cst_70 : f32 to vector<64x1xf32>
    %233 = arith.maximumf %231, %232 : vector<64x1xf32>
    %234 = tpu.reciprocal %233 {approx = true} : vector<64x1xf32> -> vector<64x1xf32>
    %235 = vector.broadcast %234 : vector<64x1xf32> to vector<64x16xf32>
    %236 = arith.mulf %229, %235 : vector<64x16xf32>
    %237 = vector.extract_strided_slice %236 {offsets = [0, 0], sizes = [16, 16], strides = [1, 1]} : vector<64x16xf32> to vector<16x16xf32>
    %238 = vector.extract_strided_slice %134 {offsets = [0, 0], sizes = [16, 8], strides = [1, 1]} : vector<16x32xf32> to vector<16x8xf32>
    %cst_71 = arith.constant dense<0.000000e+00> : vector<16x8xf32>
    %239 = tpu.matmul %237, %238, %cst_71 {dimension_numbers = #tpu.dot_dimension_numbers<[1], [0], [0], [1], [0, 0, 1, 1], [], []>} : vector<16x16xf32>, vector<16x8xf32>, vector<16x8xf32> -> vector<16x8xf32>
    %240 = vector.extract_strided_slice %236 {offsets = [16, 0], sizes = [16, 16], strides = [1, 1]} : vector<64x16xf32> to vector<16x16xf32>
    %241 = vector.extract_strided_slice %134 {offsets = [0, 8], sizes = [16, 8], strides = [1, 1]} : vector<16x32xf32> to vector<16x8xf32>
    %cst_72 = arith.constant dense<0.000000e+00> : vector<16x8xf32>
    %242 = tpu.matmul %240, %241, %cst_72 {dimension_numbers = #tpu.dot_dimension_numbers<[1], [0], [0], [1], [0, 0, 1, 1], [], []>} : vector<16x16xf32>, vector<16x8xf32>, vector<16x8xf32> -> vector<16x8xf32>
    %243 = vector.extract_strided_slice %236 {offsets = [32, 0], sizes = [16, 16], strides = [1, 1]} : vector<64x16xf32> to vector<16x16xf32>
    %244 = vector.extract_strided_slice %134 {offsets = [0, 16], sizes = [16, 8], strides = [1, 1]} : vector<16x32xf32> to vector<16x8xf32>
    %cst_73 = arith.constant dense<0.000000e+00> : vector<16x8xf32>
    %245 = tpu.matmul %243, %244, %cst_73 {dimension_numbers = #tpu.dot_dimension_numbers<[1], [0], [0], [1], [0, 0, 1, 1], [], []>} : vector<16x16xf32>, vector<16x8xf32>, vector<16x8xf32> -> vector<16x8xf32>
    %246 = vector.extract_strided_slice %236 {offsets = [48, 0], sizes = [16, 16], strides = [1, 1]} : vector<64x16xf32> to vector<16x16xf32>
    %247 = vector.extract_strided_slice %134 {offsets = [0, 24], sizes = [16, 8], strides = [1, 1]} : vector<16x32xf32> to vector<16x8xf32>
    %cst_74 = arith.constant dense<0.000000e+00> : vector<16x8xf32>
    %248 = tpu.matmul %246, %247, %cst_74 {dimension_numbers = #tpu.dot_dimension_numbers<[1], [0], [0], [1], [0, 0, 1, 1], [], []>} : vector<16x16xf32>, vector<16x8xf32>, vector<16x8xf32> -> vector<16x8xf32>
    %249 = tpu.concatenate %239, %242, %245, %248 in 1 : vector<16x8xf32>, vector<16x8xf32>, vector<16x8xf32>, vector<16x8xf32> -> vector<16x32xf32>
    %cst_75 = arith.constant dense<0.000000e+00> : vector<32xf32>
    %250 = vector.multi_reduction <add>, %249, %cst_75 [0] : vector<16x32xf32> to vector<32xf32>
    %251 = vector.shape_cast %250 : vector<32xf32> to vector<1x32xf32>
    %c0_76 = arith.constant 0 : index
    %c0_77 = arith.constant 0 : index
    %252 = vector.load %arg6[%c0_76, %c0_77] : memref<32x4xf32, #tpu.memory_space<vmem>>, vector<32x4xf32>
    %cst_78 = arith.constant dense<0.000000e+00> : vector<1x4xf32>
    %253 = tpu.matmul %251, %252, %cst_78 {dimension_numbers = #tpu.dot_dimension_numbers<[1], [0], [0], [1], [0, 0, 1, 1], [], []>} : vector<1x32xf32>, vector<32x4xf32>, vector<1x4xf32> -> vector<1x4xf32>
    %c0_79 = arith.constant 0 : index
    %c0_80 = arith.constant 0 : index
    %254 = vector.load %arg7[%c0_79, %c0_80] : memref<1x4xf32, #tpu.memory_space<vmem>>, vector<1x4xf32>
    %255 = arith.addf %253, %254 : vector<1x4xf32>
    %c0_81 = arith.constant 0 : index
    %c0_82 = arith.constant 0 : index
    %256 = vector.load %arg8[%c0_81, %c0_82] : memref<1x4xf32, #tpu.memory_space<vmem>>, vector<1x4xf32>
    tpu.vector_store %arg8[%c0_81, %c0_82], %255 {strides = array<i32>} : memref<1x4xf32, #tpu.memory_space<vmem>>, vector<1x4xf32>,
    return
  }
}

</mosaic_0001>

<llo_original>
// kernel: egat_forward.1
$region0: #{egat_forward.1}
  #allocation0 [shape = 'u32[]', space=smem, size = 0x4, offset = 0x4, fixed_abs, tag = 'smem constant byte address 0x4 - core index']
  #allocation1 [shape = 'u32[144,128]{1,0:T(1,128)}', space=vmem, size = 0x12000, scoped, tag = 'internal scratch']
  %s0 = inlined_call_operand.vmem [shape: f32[1,24], index: 0, kind: input, shape index: {}]
  %s1 = inlined_call_operand.vmem [shape: f32[16,8], index: 1, kind: input, shape index: {}]
  %s2 = inlined_call_operand.vmem [shape: f32[16,16], index: 2, kind: input, shape index: {}]
  %s3 = inlined_call_operand.vmem [shape: f32[16,16], index: 3, kind: input, shape index: {}]
  %s4 = inlined_call_operand.vmem [shape: f32[8,72], index: 4, kind: input, shape index: {}]
  %s5 = inlined_call_operand.vmem [shape: f32[64,40], index: 5, kind: input, shape index: {}]
  %s6 = inlined_call_operand.vmem [shape: f32[32,4], index: 6, kind: input, shape index: {}]
  %s7 = inlined_call_operand.vmem [shape: f32[1,4], index: 7, kind: input, shape index: {}]
  %s8 = inlined_call_operand.hbm [shape: f32[1,4], index: 8, kind: output, shape index: {}]
  %s9 = sld [smem:[#allocation0]]
  $region46: #{egat_forward.1} parent=0
    _
  %s11 = ssub.s32 1, %s9
  %s12 = scalar_select 0, %s11, %s9
  $region1: #{egat_forward.1} parent=0
    #allocation2 [shape = 'u8[512]{0}', space=smem, size = 0x200, scoped, tag = 'input window, operand 0, single buffered']
    #allocation3 [shape = 's32[1]{0}', space=sflag, size = 0x4, scoped, tag = 'scoped memory for egat_forward.1']
    #allocation4 [shape = 's32[1]{0}', space=sflag, size = 0x4, scoped, tag = 'scoped memory for egat_forward.1']
    #allocation5 [shape = 'u8[512]{0}', space=vmem, size = 0x400, scoped, tag = 'output window, operand 0, single buffered']
    %13 = vsyncpa [#allocation4], 0
    %14 = vsyncpa [#allocation3], 0
    // Predicated region
    $region2: #{egat_forward.1} parent=1 // pred_check
      _
    $region3: #{egat_forward.1} parent=1 // pred_check_branch
      %16 = sbr.rel (0) target = $region5
    $region4: #{egat_forward.1} parent=1 // pred_region
      %s18 = ssub.s32 16, 16
      %19 = vsyncadd [#allocation4], %s18
      %s21 = sshll.u32 %s0, 4
      %s22 = int_to_ptr.vmem [resolvable:$true] %s21
      %24 = dma.vmem_to_smem %s22, 16, [#allocation2], [#allocation4]
    $region5: #{egat_forward.1} parent=1 // pred_fallthru
      _
    // Predicated region
    $region6: #{egat_forward.1} parent=1 // pred_check
      _
    $region7: #{egat_forward.1} parent=1 // pred_check_branch
      %26 = sbr.rel (0) target = $region9
    $region8: #{egat_forward.1} parent=1 // pred_region
      _
    $region9: #{egat_forward.1} parent=1 // pred_fallthru
      _
    // Predicated region
    $region10: #{egat_forward.1} parent=1 // pred_check
      _
    $region11: #{egat_forward.1} parent=1 // pred_check_branch
      %28 = sbr.rel (0) target = $region13
    $region12: #{egat_forward.1} parent=1 // pred_region
      _
    $region13: #{egat_forward.1} parent=1 // pred_fallthru
      _
    // Predicated region
    $region14: #{egat_forward.1} parent=1 // pred_check
      _
    $region15: #{egat_forward.1} parent=1 // pred_check_branch
      %30 = sbr.rel (0) target = $region17
    $region16: #{egat_forward.1} parent=1 // pred_region
      _
    $region17: #{egat_forward.1} parent=1 // pred_fallthru
      _
    // Predicated region
    $region18: #{egat_forward.1} parent=1 // pred_check
      _
    $region19: #{egat_forward.1} parent=1 // pred_check_branch
      %32 = sbr.rel (0) target = $region21
    $region20: #{egat_forward.1} parent=1 // pred_region
      _
    $region21: #{egat_forward.1} parent=1 // pred_fallthru
      _
    // Predicated region
    $region22: #{egat_forward.1} parent=1 // pred_check
      _
    $region23: #{egat_forward.1} parent=1 // pred_check_branch
      %34 = sbr.rel (0) target = $region25
    $region24: #{egat_forward.1} parent=1 // pred_region
      _
    $region25: #{egat_forward.1} parent=1 // pred_fallthru
      _
    // Predicated region
    $region26: #{egat_forward.1} parent=1 // pred_check
      _
    $region27: #{egat_forward.1} parent=1 // pred_check_branch
      %36 = sbr.rel (0) target = $region29
    $region28: #{egat_forward.1} parent=1 // pred_region
      _
    $region29: #{egat_forward.1} parent=1 // pred_fallthru
      _
    // Predicated region
    $region30: #{egat_forward.1} parent=1 // pred_check
      _
    $region31: #{egat_forward.1} parent=1 // pred_check_branch
      %38 = sbr.rel (0) target = $region33
    $region32: #{egat_forward.1} parent=1 // pred_region
      _
    $region33: #{egat_forward.1} parent=1 // pred_fallthru
      _
    // Predicated region
    $region34: #{egat_forward.1} parent=1 // pred_check
      _
    $region35: #{egat_forward.1} parent=1 // pred_check_branch
      %40 = sbr.rel (0) target = $region37
    $region36: #{egat_forward.1} parent=1 // pred_region
      %41 = dma.done [#allocation4], 16
    $region37: #{egat_forward.1} parent=1 // pred_fallthru
      _
    %42 = sfence
    %v43 = vld [vmem:[%s2] sm:$0xff]
    %v44 = vld [vmem:[%s2 + $0x8] sm:$0xff]
    %v45 = vld [vmem:[%s3] sm:$0xff]
    %v46 = vld [vmem:[%s3 + $0x8] sm:$0xff]
    %vm47 = vcmp.gt.f32.partialorder %v45, 0.0
    %vm48 = vcmp.gt.f32.partialorder %v46, 0.0
    %v49 = vld [vmem:[%s1] sm:$0xff]
    %v50 = vld [vmem:[%s1 + $0x8] sm:$0xff]
    %v51 = vld [vmem:[%s4] sm:$0xff]
    %vm52 = vcmask 64512
    %v54 = vsel %vm52, %v49, 0
    %v57 = vsel %vm52, %v50, 0
    %59 = vmatprep.subr.mxu0 0.0
    %60 = vmatpush1.msra.mxu0 %v51
    %61 = vmatprep.subr.mxu0 0.0
    %62 = vmatpush1.msra.mxu0 0.0
    %63 = vmatprep.subr.mxu0 0.0
    %64 = vmatpush1.msra.mxu0 0.0
    %65 = vmatprep.subr.mxu0 0.0
    %66 = vmatpush1.msra.mxu0 0.0
    %67 = vmatprep.subr.mxu0 0.0
    %68 = vmatpush1.msra.mxu0 0.0
    %69 = vmatprep.subr.mxu0 0.0
    %70 = vmatpush1.msra.mxu0 0.0
    %71 = vmatprep.subr.mxu0 0.0
    %72 = vmatpush1.msra.mxu0 0.0
    %73 = vmatprep.subr.mxu0 0.0
    %74 = vmatpush1.msra.mxu0 0.0
    %75 = vmatprep.subr.mxu0 0.0
    %76 = vmatpush1.msra.mxu0 0.0
    %77 = vmatprep.subr.mxu0 0.0
    %78 = vmatpush1.msra.mxu0 0.0
    %79 = vmatprep.subr.mxu0 0.0
    %80 = vmatpush1.msra.mxu0 0.0
    %81 = vmatprep.subr.mxu0 0.0
    %82 = vmatpush1.msra.mxu0 0.0
    %83 = vmatprep.subr.mxu0 0.0
    %84 = vmatpush1.msra.mxu0 0.0
    %85 = vmatprep.subr.mxu0 0.0
    %86 = vmatpush1.msra.mxu0 0.0
    %87 = vmatprep.subr.mxu0 0.0
    %88 = vmatpush1.msra.mxu0 0.0
    %89 = vmatprep.subr.mxu0 0.0
    %90 = vmatpush1.msra.mxu0 0.0
    %91 = vmatprep.subr.mxu0 0.0
    %92 = vmatpush1.msra.mxu0 0.0
    %93 = vmatprep.subr.mxu0 0.0
    %94 = vmatpush1.msra.mxu0 0.0
    %95 = vmatprep.subr.mxu0 0.0
    %96 = vmatpush1.msra.mxu0 0.0
    %97 = vmatprep.subr.mxu0 0.0
    %98 = vmatpush1.msra.mxu0 0.0
    %99 = vmatprep.subr.mxu0 0.0
    %100 = vmatpush1.msra.mxu0 0.0
    %101 = vmatprep.subr.mxu0 0.0
    %102 = vmatpush1.msra.mxu0 0.0
    %103 = vmatprep.subr.mxu0 0.0
    %104 = vmatpush1.msra.mxu0 0.0
    %105 = vmatprep.subr.mxu0 0.0
    %106 = vmatpush1.msra.mxu0 0.0
    %107 = vmatprep.subr.mxu0 0.0
    %108 = vmatpush1.msra.mxu0 0.0
    %109 = vmatprep.subr.mxu0 0.0
    %110 = vmatpush1.msra.mxu0 0.0
    %111 = vmatprep.subr.mxu0 0.0
    %112 = vmatpush1.msra.mxu0 0.0
    %113 = vmatprep.subr.mxu0 0.0
    %114 = vmatpush1.msra.mxu0 0.0
    %115 = vmatprep.subr.mxu0 0.0
    %116 = vmatpush1.msra.mxu0 0.0
    %117 = vmatprep.subr.mxu0 0.0
    %118 = vmatpush1.msra.mxu0 0.0
    %119 = vmatprep.subr.mxu0 0.0
    %120 = vmatpush1.msra.mxu0 0.0
    %121 = vmatprep.subr.mxu0 0.0
    %122 = vmatpush1.msra.mxu0 0.0
    %123 = vmatprep.mubr.f32.mxu0 0.0
    %124 = vmatmul.mubr.f32.gmra.mrb[0].mxu0 %v54
    %v125 = vpop.f32.mrb[0].mxu0
    %v126 = vadd.f32 0.0, %v125
    %v127 = vpop.f32.mrb[0].mxu0
    %128 = vmatprep.mubr.f32.mxu0 0.0
    %129 = vmatmul.mubr.f32.gmra.mrb[0].mxu0 %v57
    %v130 = vpop.f32.mrb[0].mxu0
    %v131 = vadd.f32 0.0, %v130
    %v132 = vpop.f32.mrb[0].mxu0
    %133 = vdwg.mxu0
    %134 = vxpose.xlu0.b32.start [1/16] %v126, 128
    %135 = vxpose.xlu0.b32.cont [2/16] %v131, 128
    %136 = vxpose.xlu0.b32.cont [3/16] 0.0, 128
    %137 = vxpose.xlu0.b32.cont [4/16] 0.0, 128
    %138 = vxpose.xlu0.b32.cont [5/16] 0.0, 128
    %139 = vxpose.xlu0.b32.cont [6/16] 0.0, 128
    %140 = vxpose.xlu0.b32.cont [7/16] 0.0, 128
    %141 = vxpose.xlu0.b32.cont [8/16] 0.0, 128
    %142 = vxpose.xlu0.b32.cont [9/16] 0.0, 128
    %143 = vxpose.xlu0.b32.cont [10/16] 0.0, 128
    %144 = vxpose.xlu0.b32.cont [11/16] 0.0, 128
    %145 = vxpose.xlu0.b32.cont [12/16] 0.0, 128
    %146 = vxpose.xlu0.b32.cont [13/16] 0.0, 128
    %147 = vxpose.xlu0.b32.cont [14/16] 0.0, 128
    %148 = vxpose.xlu0.b32.cont [15/16] 0.0, 128
    %149 = vxpose.xlu0.b32.end [16/16] 0.0, 128
    %v150 = vpop.trf.xlu0
    %v151 = vpop.trf.xlu0
    %v152 = vpop.trf.xlu0
    %v153 = vpop.trf.xlu0
    %v154 = vpop.trf.xlu0
    %v155 = vpop.trf.xlu0
    %v156 = vpop.trf.xlu0
    %v157 = vpop.trf.xlu0
    %v158 = vpop.trf.xlu0
    %v159 = vpop.trf.xlu0
    %v160 = vpop.trf.xlu0
    %v161 = vpop.trf.xlu0
    %v162 = vpop.trf.xlu0
    %v163 = vpop.trf.xlu0
    %v164 = vpop.trf.xlu0
    %v165 = vpop.trf.xlu0
    %s166 = sld [smem:[#allocation2]]
    %s167 = sld [smem:[#allocation2 + $0x4]]
    %s168 = sld [smem:[#allocation2 + $0x8]]
    %v169 = vstv %s166
    %v170 = vmul.f32 %v43, %v169
    %v171 = vmul.f32 %v44, %v169
    %v172 = vlaneseq
    %v173 = vshrl.u32 %v172, 7
    %v174 = vsub.s32 0, %v173
    %v175 = vrot.slane %v150, %v174
    %v176 = vadd.f32 %v170, %v175
    %v177 = vadd.f32 %v171, %v175
    %v178 = vstv %s168
    %v179 = vadd.f32 %v126, %v178
    %v180 = vadd.f32 %v131, %v178
    %182 = vset.pattern.permute.xlu0 4
    %183 = vperm.xlu0 %182, %v179
    %v184 = vpop.permute.xlu0 %183
    %187 = vset.pattern.permute.xlu0 4
    %188 = vperm.xlu0 %187, %v180
    %v189 = vpop.permute.xlu0 %188
    %v191 = vadd.f32 %v176, %v184
    %v192 = vadd.f32 %v177, %v189
    %vm193 = vcmp.gt.f32.partialorder %v191, 0.0
    %vm194 = vcmp.gt.f32.partialorder %v192, 0.0
    %v195 = vmul.f32 %v191, 0.01
    %v196 = vmul.f32 %v192, 0.01
    %v197 = vsel %vm193, %v191, %v195
    %v198 = vsel %vm194, %v192, %v196
    %v199 = vstv %s167
    %v200 = vmul.f32 %v197, %v199
    %v201 = vmul.f32 %v198, %v199
    %v202 = vsel %vm47, %v200, -1e+30
    %v203 = vsel %vm48, %v201, -1e+30
    %s204 = sld [smem:[#allocation2 + $0x1]]
    %s205 = sld [smem:[#allocation2 + $0x5]]
    %s206 = sld [smem:[#allocation2 + $0x9]]
    %v207 = vstv %s204
    %v208 = vmul.f32 %v43, %v207
    %v209 = vmul.f32 %v44, %v207
    %v210 = vlaneseq
    %v211 = vshrl.u32 %v210, 7
    %v212 = vsub.s32 1, %v211
    %v213 = vrot.slane %v150, %v212
    %v214 = vadd.f32 %v208, %v213
    %v215 = vadd.f32 %v209, %v213
    %v216 = vstv %s206
    %v217 = vadd.f32 %v126, %v216
    %v218 = vadd.f32 %v131, %v216
    %220 = vset.pattern.permute.xlu0 5
    %221 = vperm.xlu0 %220, %v217
    %v222 = vpop.permute.xlu0 %221
    %225 = vset.pattern.permute.xlu0 5
    %226 = vperm.xlu0 %225, %v218
    %v227 = vpop.permute.xlu0 %226
    %v229 = vadd.f32 %v214, %v222
    %v230 = vadd.f32 %v215, %v227
    %vm231 = vcmp.gt.f32.partialorder %v229, 0.0
    %vm232 = vcmp.gt.f32.partialorder %v230, 0.0
    %v233 = vmul.f32 %v229, 0.01
    %v234 = vmul.f32 %v230, 0.01
    %v235 = vsel %vm231, %v229, %v233
    %v236 = vsel %vm232, %v230, %v234
    %v237 = vstv %s205
    %v238 = vmul.f32 %v235, %v237
    %v239 = vmul.f32 %v236, %v237
    %v240 = vsel %vm47, %v238, -1e+30
    %v241 = vsel %vm48, %v239, -1e+30
    %s242 = sld [smem:[#allocation2 + $0x2]]
    %s243 = sld [smem:[#allocation2 + $0x6]]
    %s244 = sld [smem:[#allocation2 + $0xa]]
    %v245 = vstv %s242
    %v246 = vmul.f32 %v43, %v245
    %v247 = vmul.f32 %v44, %v245
    %v248 = vlaneseq
    %v249 = vshrl.u32 %v248, 7
    %v250 = vsub.s32 2, %v249
    %v251 = vrot.slane %v150, %v250
    %v252 = vadd.f32 %v246, %v251
    %v253 = vadd.f32 %v247, %v251
    %v254 = vstv %s244
    %v255 = vadd.f32 %v126, %v254
    %v256 = vadd.f32 %v131, %v254
    %258 = vset.pattern.permute.xlu0 6
    %259 = vperm.xlu0 %258, %v255
    %v260 = vpop.permute.xlu0 %259
    %263 = vset.pattern.permute.xlu0 6
    %264 = vperm.xlu0 %263, %v256
    %v265 = vpop.permute.xlu0 %264
    %v267 = vadd.f32 %v252, %v260
    %v268 = vadd.f32 %v253, %v265
    %vm269 = vcmp.gt.f32.partialorder %v267, 0.0
    %vm270 = vcmp.gt.f32.partialorder %v268, 0.0
    %v271 = vmul.f32 %v267, 0.01
    %v272 = vmul.f32 %v268, 0.01
    %v273 = vsel %vm269, %v267, %v271
    %v274 = vsel %vm270, %v268, %v272
    %v275 = vstv %s243
    %v276 = vmul.f32 %v273, %v275
    %v277 = vmul.f32 %v274, %v275
    %v278 = vsel %vm47, %v276, -1e+30
    %v279 = vsel %vm48, %v277, -1e+30
    %s280 = sld [smem:[#allocation2 + $0x3]]
    %s281 = sld [smem:[#allocation2 + $0x7]]
    %s282 = sld [smem:[#allocation2 + $0xb]]
    %v283 = vstv %s280
    %v284 = vmul.f32 %v43, %v283
    %v285 = vmul.f32 %v44, %v283
    %v286 = vlaneseq
    %v287 = vshrl.u32 %v286, 7
    %v288 = vsub.s32 3, %v287
    %v289 = vrot.slane %v150, %v288
    %v290 = vadd.f32 %v284, %v289
    %v291 = vadd.f32 %v285, %v289
    %v292 = vstv %s282
    %v293 = vadd.f32 %v126, %v292
    %v294 = vadd.f32 %v131, %v292
    %296 = vset.pattern.permute.xlu0 7
    %297 = vperm.xlu0 %296, %v293
    %v298 = vpop.permute.xlu0 %297
    %301 = vset.pattern.permute.xlu0 7
    %302 = vperm.xlu0 %301, %v294
    %v303 = vpop.permute.xlu0 %302
    %v305 = vadd.f32 %v290, %v298
    %v306 = vadd.f32 %v291, %v303
    %vm307 = vcmp.gt.f32.partialorder %v305, 0.0
    %vm308 = vcmp.gt.f32.partialorder %v306, 0.0
    %v309 = vmul.f32 %v305, 0.01
    %v310 = vmul.f32 %v306, 0.01
    %v311 = vsel %vm307, %v305, %v309
    %v312 = vsel %vm308, %v306, %v310
    %v313 = vstv %s281
    %v314 = vmul.f32 %v311, %v313
    %v315 = vmul.f32 %v312, %v313
    %v316 = vsel %vm47, %v314, -1e+30
    %v317 = vsel %vm48, %v315, -1e+30
    %vm318 = vcmask 130048
    %v319 = vsel %vm318, %v202, -inf
    %320 = vmax.xlane.f32.xlu0 %v319
    %v321 = vpop.xlane.xlu0 %320
    %v322 = vsel %vm318, %v203, -inf
    %323 = vmax.xlane.f32.xlu0 %v322
    %v324 = vpop.xlane.xlu0 %323
    %v325 = vsel %vm318, %v240, -inf
    %326 = vmax.xlane.f32.xlu0 %v325
    %v327 = vpop.xlane.xlu0 %326
    %v328 = vsel %vm318, %v241, -inf
    %329 = vmax.xlane.f32.xlu0 %v328
    %v330 = vpop.xlane.xlu0 %329
    %v331 = vsel %vm318, %v278, -inf
    %332 = vmax.xlane.f32.xlu0 %v331
    %v333 = vpop.xlane.xlu0 %332
    %v334 = vsel %vm318, %v279, -inf
    %335 = vmax.xlane.f32.xlu0 %v334
    %v336 = vpop.xlane.xlu0 %335
    %v337 = vsel %vm318, %v316, -inf
    %338 = vmax.xlane.f32.xlu0 %v337
    %v339 = vpop.xlane.xlu0 %338
    %v340 = vsel %vm318, %v317, -inf
    %341 = vmax.xlane.f32.xlu0 %v340
    %v342 = vpop.xlane.xlu0 %341
    %v343 = vsub.f32 %v202, %v321
    %v344 = vsub.f32 %v203, %v324
    %v345 = vsub.f32 %v240, %v327
    %v346 = vsub.f32 %v241, %v330
    %v347 = vsub.f32 %v278, %v333
    %v348 = vsub.f32 %v279, %v336
    %v349 = vsub.f32 %v316, %v339
    %v350 = vsub.f32 %v317, %v342
    %v351 = vmul.f32 %v343, 1.442695
    %v352 = vpow.pop %v351
    %v353 = vmul.f32 %v344, 1.442695
    %v354 = vpow.pop %v353
    %v355 = vmul.f32 %v345, 1.442695
    %v356 = vpow.pop %v355
    %v357 = vmul.f32 %v346, 1.442695
    %v358 = vpow.pop %v357
    %v359 = vmul.f32 %v347, 1.442695
    %v360 = vpow.pop %v359
    %v361 = vmul.f32 %v348, 1.442695
    %v362 = vpow.pop %v361
    %v363 = vmul.f32 %v349, 1.442695
    %v364 = vpow.pop %v363
    %v365 = vmul.f32 %v350, 1.442695
    %v366 = vpow.pop %v365
    %v367 = vmul.f32 %v352, %v45
    %v368 = vmul.f32 %v354, %v46
    %v369 = vmul.f32 %v356, %v45
    %v370 = vmul.f32 %v358, %v46
    %v371 = vmul.f32 %v360, %v45
    %v372 = vmul.f32 %v362, %v46
    %v373 = vmul.f32 %v364, %v45
    %v374 = vmul.f32 %v366, %v46
    %v375 = vsel %vm318, %v367, 0.0
    %376 = vadd.xlane.f32.xlu0 %v375
    %v377 = vpop.xlane.xlu0 %376
    %v378 = vsel %vm318, %v368, 0.0
    %379 = vadd.xlane.f32.xlu0 %v378
    %v380 = vpop.xlane.xlu0 %379
    %v381 = vsel %vm318, %v369, 0.0
    %382 = vadd.xlane.f32.xlu0 %v381
    %v383 = vpop.xlane.xlu0 %382
    %v384 = vsel %vm318, %v370, 0.0
    %385 = vadd.xlane.f32.xlu0 %v384
    %v386 = vpop.xlane.xlu0 %385
    %v387 = vsel %vm318, %v371, 0.0
    %388 = vadd.xlane.f32.xlu0 %v387
    %v389 = vpop.xlane.xlu0 %388
    %v390 = vsel %vm318, %v372, 0.0
    %391 = vadd.xlane.f32.xlu0 %v390
    %v392 = vpop.xlane.xlu0 %391
    %v393 = vsel %vm318, %v373, 0.0
    %394 = vadd.xlane.f32.xlu0 %v393
    %v395 = vpop.xlane.xlu0 %394
    %v396 = vsel %vm318, %v374, 0.0
    %397 = vadd.xlane.f32.xlu0 %v396
    %v398 = vpop.xlane.xlu0 %397
    %v399 = vmax.f32 %v377, 1e-20
    %v400 = vmax.f32 %v380, 1e-20
    %v401 = vmax.f32 %v383, 1e-20
    %v402 = vmax.f32 %v386, 1e-20
    %v403 = vmax.f32 %v389, 1e-20
    %v404 = vmax.f32 %v392, 1e-20
    %v405 = vmax.f32 %v395, 1e-20
    %v406 = vmax.f32 %v398, 1e-20
    %v407 = vrcp.pop %v399
    %v408 = vrcp.pop %v400
    %v409 = vrcp.pop %v401
    %v410 = vrcp.pop %v402
    %v411 = vrcp.pop %v403
    %v412 = vrcp.pop %v404
    %v413 = vrcp.pop %v405
    %v414 = vrcp.pop %v406
    %v415 = vmul.f32 %v367, %v407
    %v416 = vmul.f32 %v368, %v408
    %v417 = vmul.f32 %v369, %v409
    %v418 = vmul.f32 %v370, %v410
    %v419 = vmul.f32 %v371, %v411
    %v420 = vmul.f32 %v372, %v412
    %v421 = vmul.f32 %v373, %v413
    %v422 = vmul.f32 %v374, %v414
    %425 = vrot.lane.b32.xlu0 %v126, 120
    %v426 = vpop.permute.xlu0 %425
    %427 = vrot.lane.b32.xlu0 %v131, 120
    %v428 = vpop.permute.xlu0 %427
    %v432 = vsel %vm318, %v415, 0
    %v435 = vsel %vm318, %v416, 0
    %437 = vmatprep.subr.mxu0 0.0
    %438 = vmatpush1.msra.mxu0 %v426
    %439 = vmatprep.subr.mxu0 0.0
    %440 = vmatpush1.msra.mxu0 %v428
    %441 = vmatprep.subr.mxu0 0.0
    %442 = vmatpush1.msra.mxu0 0.0
    %443 = vmatprep.subr.mxu0 0.0
    %444 = vmatpush1.msra.mxu0 0.0
    %445 = vmatprep.subr.mxu0 0.0
    %446 = vmatpush1.msra.mxu0 0.0
    %447 = vmatprep.subr.mxu0 0.0
    %448 = vmatpush1.msra.mxu0 0.0
    %449 = vmatprep.subr.mxu0 0.0
    %450 = vmatpush1.msra.mxu0 0.0
    %451 = vmatprep.subr.mxu0 0.0
    %452 = vmatpush1.msra.mxu0 0.0
    %453 = vmatprep.subr.mxu0 0.0
    %454 = vmatpush1.msra.mxu0 0.0
    %455 = vmatprep.subr.mxu0 0.0
    %456 = vmatpush1.msra.mxu0 0.0
    %457 = vmatprep.subr.mxu0 0.0
    %458 = vmatpush1.msra.mxu0 0.0
    %459 = vmatprep.subr.mxu0 0.0
    %460 = vmatpush1.msra.mxu0 0.0
    %461 = vmatprep.subr.mxu0 0.0
    %462 = vmatpush1.msra.mxu0 0.0
    %463 = vmatprep.subr.mxu0 0.0
    %464 = vmatpush1.msra.mxu0 0.0
    %465 = vmatprep.subr.mxu0 0.0
    %466 = vmatpush1.msra.mxu0 0.0
    %467 = vmatprep.subr.mxu0 0.0
    %468 = vmatpush1.msra.mxu0 0.0
    %469 = vmatprep.subr.mxu0 0.0
    %470 = vmatpush1.msra.mxu0 0.0
    %471 = vmatprep.subr.mxu0 0.0
    %472 = vmatpush1.msra.mxu0 0.0
    %473 = vmatprep.subr.mxu0 0.0
    %474 = vmatpush1.msra.mxu0 0.0
    %475 = vmatprep.subr.mxu0 0.0
    %476 = vmatpush1.msra.mxu0 0.0
    %477 = vmatprep.subr.mxu0 0.0
    %478 = vmatpush1.msra.mxu0 0.0
    %479 = vmatprep.subr.mxu0 0.0
    %480 = vmatpush1.msra.mxu0 0.0
    %481 = vmatprep.subr.mxu0 0.0
    %482 = vmatpush1.msra.mxu0 0.0
    %483 = vmatprep.subr.mxu0 0.0
    %484 = vmatpush1.msra.mxu0 0.0
    %485 = vmatprep.subr.mxu0 0.0
    %486 = vmatpush1.msra.mxu0 0.0
    %487 = vmatprep.subr.mxu0 0.0
    %488 = vmatpush1.msra.mxu0 0.0
    %489 = vmatprep.subr.mxu0 0.0
    %490 = vmatpush1.msra.mxu0 0.0
    %491 = vmatprep.subr.mxu0 0.0
    %492 = vmatpush1.msra.mxu0 0.0
    %493 = vmatprep.subr.mxu0 0.0
    %494 = vmatpush1.msra.mxu0 0.0
    %495 = vmatprep.subr.mxu0 0.0
    %496 = vmatpush1.msra.mxu0 0.0
    %497 = vmatprep.subr.mxu0 0.0
    %498 = vmatpush1.msra.mxu0 0.0
    %499 = vmatprep.subr.mxu0 0.0
    %500 = vmatpush1.msra.mxu0 0.0
    %501 = vmatprep.mubr.f32.mxu0 0.0
    %502 = vmatmul.mubr.f32.gmra.mrb[0].mxu0 %v432
    %v503 = vpop.f32.mrb[0].mxu0
    %v504 = vadd.f32 0.0, %v503
    %v505 = vpop.f32.mrb[0].mxu0
    %506 = vmatprep.mubr.f32.mxu0 0.0
    %507 = vmatmul.mubr.f32.gmra.mrb[0].mxu0 %v435
    %v508 = vpop.f32.mrb[0].mxu0
    %v509 = vadd.f32 0.0, %v508
    %v510 = vpop.f32.mrb[0].mxu0
    %511 = vdwg.mxu0
    %512 = vrot.lane.b32.xlu0 %v126, 104
    %v513 = vpop.permute.xlu0 %512
    %514 = vrot.lane.b32.xlu0 %v131, 104
    %v515 = vpop.permute.xlu0 %514
    %v519 = vsel %vm318, %v417, 0
    %v522 = vsel %vm318, %v418, 0
    %524 = vmatprep.subr.mxu0 0.0
    %525 = vmatpush1.msra.mxu0 %v513
    %526 = vmatprep.subr.mxu0 0.0
    %527 = vmatpush1.msra.mxu0 %v515
    %528 = vmatprep.subr.mxu0 0.0
    %529 = vmatpush1.msra.mxu0 0.0
    %530 = vmatprep.subr.mxu0 0.0
    %531 = vmatpush1.msra.mxu0 0.0
    %532 = vmatprep.subr.mxu0 0.0
    %533 = vmatpush1.msra.mxu0 0.0
    %534 = vmatprep.subr.mxu0 0.0
    %535 = vmatpush1.msra.mxu0 0.0
    %536 = vmatprep.subr.mxu0 0.0
    %537 = vmatpush1.msra.mxu0 0.0
    %538 = vmatprep.subr.mxu0 0.0
    %539 = vmatpush1.msra.mxu0 0.0
    %540 = vmatprep.subr.mxu0 0.0
    %541 = vmatpush1.msra.mxu0 0.0
    %542 = vmatprep.subr.mxu0 0.0
    %543 = vmatpush1.msra.mxu0 0.0
    %544 = vmatprep.subr.mxu0 0.0
    %545 = vmatpush1.msra.mxu0 0.0
    %546 = vmatprep.subr.mxu0 0.0
    %547 = vmatpush1.msra.mxu0 0.0
    %548 = vmatprep.subr.mxu0 0.0
    %549 = vmatpush1.msra.mxu0 0.0
    %550 = vmatprep.subr.mxu0 0.0
    %551 = vmatpush1.msra.mxu0 0.0
    %552 = vmatprep.subr.mxu0 0.0
    %553 = vmatpush1.msra.mxu0 0.0
    %554 = vmatprep.subr.mxu0 0.0
    %555 = vmatpush1.msra.mxu0 0.0
    %556 = vmatprep.subr.mxu0 0.0
    %557 = vmatpush1.msra.mxu0 0.0
    %558 = vmatprep.subr.mxu0 0.0
    %559 = vmatpush1.msra.mxu0 0.0
    %560 = vmatprep.subr.mxu0 0.0
    %561 = vmatpush1.msra.mxu0 0.0
    %562 = vmatprep.subr.mxu0 0.0
    %563 = vmatpush1.msra.mxu0 0.0
    %564 = vmatprep.subr.mxu0 0.0
    %565 = vmatpush1.msra.mxu0 0.0
    %566 = vmatprep.subr.mxu0 0.0
    %567 = vmatpush1.msra.mxu0 0.0
    %568 = vmatprep.subr.mxu0 0.0
    %569 = vmatpush1.msra.mxu0 0.0
    %570 = vmatprep.subr.mxu0 0.0
    %571 = vmatpush1.msra.mxu0 0.0
    %572 = vmatprep.subr.mxu0 0.0
    %573 = vmatpush1.msra.mxu0 0.0
    %574 = vmatprep.subr.mxu0 0.0
    %575 = vmatpush1.msra.mxu0 0.0
    %576 = vmatprep.subr.mxu0 0.0
    %577 = vmatpush1.msra.mxu0 0.0
    %578 = vmatprep.subr.mxu0 0.0
    %579 = vmatpush1.msra.mxu0 0.0
    %580 = vmatprep.subr.mxu0 0.0
    %581 = vmatpush1.msra.mxu0 0.0
    %582 = vmatprep.subr.mxu0 0.0
    %583 = vmatpush1.msra.mxu0 0.0
    %584 = vmatprep.subr.mxu0 0.0
    %585 = vmatpush1.msra.mxu0 0.0
    %586 = vmatprep.subr.mxu0 0.0
    %587 = vmatpush1.msra.mxu0 0.0
    %588 = vmatprep.mubr.f32.mxu0 0.0
    %589 = vmatmul.mubr.f32.gmra.mrb[0].mxu0 %v519
    %v590 = vpop.f32.mrb[0].mxu0
    %v591 = vadd.f32 0.0, %v590
    %v592 = vpop.f32.mrb[0].mxu0
    %593 = vmatprep.mubr.f32.mxu0 0.0
    %594 = vmatmul.mubr.f32.gmra.mrb[0].mxu0 %v522
    %v595 = vpop.f32.mrb[0].mxu0
    %v596 = vadd.f32 0.0, %v595
    %v597 = vpop.f32.mrb[0].mxu0
    %598 = vdwg.mxu0
    %599 = vrot.lane.b32.xlu0 %v126, 88
    %v600 = vpop.permute.xlu0 %599
    %601 = vrot.lane.b32.xlu0 %v131, 88
    %v602 = vpop.permute.xlu0 %601
    %v606 = vsel %vm318, %v419, 0
    %v609 = vsel %vm318, %v420, 0
    %611 = vmatprep.subr.mxu0 0.0
    %612 = vmatpush1.msra.mxu0 %v600
    %613 = vmatprep.subr.mxu0 0.0
    %614 = vmatpush1.msra.mxu0 %v602
    %615 = vmatprep.subr.mxu0 0.0
    %616 = vmatpush1.msra.mxu0 0.0
    %617 = vmatprep.subr.mxu0 0.0
    %618 = vmatpush1.msra.mxu0 0.0
    %619 = vmatprep.subr.mxu0 0.0
    %620 = vmatpush1.msra.mxu0 0.0
    %621 = vmatprep.subr.mxu0 0.0
    %622 = vmatpush1.msra.mxu0 0.0
    %623 = vmatprep.subr.mxu0 0.0
    %624 = vmatpush1.msra.mxu0 0.0
    %625 = vmatprep.subr.mxu0 0.0
    %626 = vmatpush1.msra.mxu0 0.0
    %627 = vmatprep.subr.mxu0 0.0
    %628 = vmatpush1.msra.mxu0 0.0
    %629 = vmatprep.subr.mxu0 0.0
    %630 = vmatpush1.msra.mxu0 0.0
    %631 = vmatprep.subr.mxu0 0.0
    %632 = vmatpush1.msra.mxu0 0.0
    %633 = vmatprep.subr.mxu0 0.0
    %634 = vmatpush1.msra.mxu0 0.0
    %635 = vmatprep.subr.mxu0 0.0
    %636 = vmatpush1.msra.mxu0 0.0
    %637 = vmatprep.subr.mxu0 0.0
    %638 = vmatpush1.msra.mxu0 0.0
    %639 = vmatprep.subr.mxu0 0.0
    %640 = vmatpush1.msra.mxu0 0.0
    %641 = vmatprep.subr.mxu0 0.0
    %642 = vmatpush1.msra.mxu0 0.0
    %643 = vmatprep.subr.mxu0 0.0
    %644 = vmatpush1.msra.mxu0 0.0
    %645 = vmatprep.subr.mxu0 0.0
    %646 = vmatpush1.msra.mxu0 0.0
    %647 = vmatprep.subr.mxu0 0.0
    %648 = vmatpush1.msra.mxu0 0.0
    %649 = vmatprep.subr.mxu0 0.0
    %650 = vmatpush1.msra.mxu0 0.0
    %651 = vmatprep.subr.mxu0 0.0
    %652 = vmatpush1.msra.mxu0 0.0
    %653 = vmatprep.subr.mxu0 0.0
    %654 = vmatpush1.msra.mxu0 0.0
    %655 = vmatprep.subr.mxu0 0.0
    %656 = vmatpush1.msra.mxu0 0.0
    %657 = vmatprep.subr.mxu0 0.0
    %658 = vmatpush1.msra.mxu0 0.0
    %659 = vmatprep.subr.mxu0 0.0
    %660 = vmatpush1.msra.mxu0 0.0
    %661 = vmatprep.subr.mxu0 0.0
    %662 = vmatpush1.msra.mxu0 0.0
    %663 = vmatprep.subr.mxu0 0.0
    %664 = vmatpush1.msra.mxu0 0.0
    %665 = vmatprep.subr.mxu0 0.0
    %666 = vmatpush1.msra.mxu0 0.0
    %667 = vmatprep.subr.mxu0 0.0
    %668 = vmatpush1.msra.mxu0 0.0
    %669 = vmatprep.subr.mxu0 0.0
    %670 = vmatpush1.msra.mxu0 0.0
    %671 = vmatprep.subr.mxu0 0.0
    %672 = vmatpush1.msra.mxu0 0.0
    %673 = vmatprep.subr.mxu0 0.0
    %674 = vmatpush1.msra.mxu0 0.0
    %675 = vmatprep.mubr.f32.mxu0 0.0
    %676 = vmatmul.mubr.f32.gmra.mrb[0].mxu0 %v606
    %v677 = vpop.f32.mrb[0].mxu0
    %v678 = vadd.f32 0.0, %v677
    %v679 = vpop.f32.mrb[0].mxu0
    %680 = vmatprep.mubr.f32.mxu0 0.0
    %681 = vmatmul.mubr.f32.gmra.mrb[0].mxu0 %v609
    %v682 = vpop.f32.mrb[0].mxu0
    %v683 = vadd.f32 0.0, %v682
    %v684 = vpop.f32.mrb[0].mxu0
    %685 = vdwg.mxu0
    %686 = vrot.lane.b32.xlu0 %v126, 72
    %v687 = vpop.permute.xlu0 %686
    %688 = vrot.lane.b32.xlu0 %v131, 72
    %v689 = vpop.permute.xlu0 %688
    %v693 = vsel %vm318, %v421, 0
    %v696 = vsel %vm318, %v422, 0
    %698 = vmatprep.subr.mxu0 0.0
    %699 = vmatpush1.msra.mxu0 %v687
    %700 = vmatprep.subr.mxu0 0.0
    %701 = vmatpush1.msra.mxu0 %v689
    %702 = vmatprep.subr.mxu0 0.0
    %703 = vmatpush1.msra.mxu0 0.0
    %704 = vmatprep.subr.mxu0 0.0
    %705 = vmatpush1.msra.mxu0 0.0
    %706 = vmatprep.subr.mxu0 0.0
    %707 = vmatpush1.msra.mxu0 0.0
    %708 = vmatprep.subr.mxu0 0.0
    %709 = vmatpush1.msra.mxu0 0.0
    %710 = vmatprep.subr.mxu0 0.0
    %711 = vmatpush1.msra.mxu0 0.0
    %712 = vmatprep.subr.mxu0 0.0
    %713 = vmatpush1.msra.mxu0 0.0
    %714 = vmatprep.subr.mxu0 0.0
    %715 = vmatpush1.msra.mxu0 0.0
    %716 = vmatprep.subr.mxu0 0.0
    %717 = vmatpush1.msra.mxu0 0.0
    %718 = vmatprep.subr.mxu0 0.0
    %719 = vmatpush1.msra.mxu0 0.0
    %720 = vmatprep.subr.mxu0 0.0
    %721 = vmatpush1.msra.mxu0 0.0
    %722 = vmatprep.subr.mxu0 0.0
    %723 = vmatpush1.msra.mxu0 0.0
    %724 = vmatprep.subr.mxu0 0.0
    %725 = vmatpush1.msra.mxu0 0.0
    %726 = vmatprep.subr.mxu0 0.0
    %727 = vmatpush1.msra.mxu0 0.0
    %728 = vmatprep.subr.mxu0 0.0
    %729 = vmatpush1.msra.mxu0 0.0
    %730 = vmatprep.subr.mxu0 0.0
    %731 = vmatpush1.msra.mxu0 0.0
    %732 = vmatprep.subr.mxu0 0.0
    %733 = vmatpush1.msra.mxu0 0.0
    %734 = vmatprep.subr.mxu0 0.0
    %735 = vmatpush1.msra.mxu0 0.0
    %736 = vmatprep.subr.mxu0 0.0
    %737 = vmatpush1.msra.mxu0 0.0
    %738 = vmatprep.subr.mxu0 0.0
    %739 = vmatpush1.msra.mxu0 0.0
    %740 = vmatprep.subr.mxu0 0.0
    %741 = vmatpush1.msra.mxu0 0.0
    %742 = vmatprep.subr.mxu0 0.0
    %743 = vmatpush1.msra.mxu0 0.0
    %744 = vmatprep.subr.mxu0 0.0
    %745 = vmatpush1.msra.mxu0 0.0
    %746 = vmatprep.subr.mxu0 0.0
    %747 = vmatpush1.msra.mxu0 0.0
    %748 = vmatprep.subr.mxu0 0.0
    %749 = vmatpush1.msra.mxu0 0.0
    %750 = vmatprep.subr.mxu0 0.0
    %751 = vmatpush1.msra.mxu0 0.0
    %752 = vmatprep.subr.mxu0 0.0
    %753 = vmatpush1.msra.mxu0 0.0
    %754 = vmatprep.subr.mxu0 0.0
    %755 = vmatpush1.msra.mxu0 0.0
    %756 = vmatprep.subr.mxu0 0.0
    %757 = vmatpush1.msra.mxu0 0.0
    %758 = vmatprep.subr.mxu0 0.0
    %759 = vmatpush1.msra.mxu0 0.0
    %760 = vmatprep.subr.mxu0 0.0
    %761 = vmatpush1.msra.mxu0 0.0
    %762 = vmatprep.mubr.f32.mxu0 0.0
    %763 = vmatmul.mubr.f32.gmra.mrb[0].mxu0 %v693
    %v764 = vpop.f32.mrb[0].mxu0
    %v765 = vadd.f32 0.0, %v764
    %v766 = vpop.f32.mrb[0].mxu0
    %767 = vmatprep.mubr.f32.mxu0 0.0
    %768 = vmatmul.mubr.f32.gmra.mrb[0].mxu0 %v696
    %v769 = vpop.f32.mrb[0].mxu0
    %v770 = vadd.f32 0.0, %v769
    %v771 = vpop.f32.mrb[0].mxu0
    %772 = vdwg.mxu0
    %775 = vrot.lane.b32.xlu0 %v591, 16
    %v776 = vpop.permute.xlu0 %775
    %777 = vrot.lane.b32.xlu0 %v596, 16
    %v778 = vpop.permute.xlu0 %777
    %783 = vrot.lane.b32.xlu0 %v678, 32
    %v784 = vpop.permute.xlu0 %783
    %785 = vrot.lane.b32.xlu0 %v683, 32
    %v786 = vpop.permute.xlu0 %785
    %791 = vrot.lane.b32.xlu0 %v765, 48
    %v792 = vpop.permute.xlu0 %791
    %793 = vrot.lane.b32.xlu0 %v770, 48
    %v794 = vpop.permute.xlu0 %793
    %v797 = vsel %vm318, %v504, %v776
    %v798 = vsel %vm318, %v509, %v778
    %vm799 = vcmask 261120
    %v800 = vsel %vm799, %v797, %v784
    %v801 = vsel %vm799, %v798, %v786
    %vm802 = vcmask 392192
    %v803 = vsel %vm802, %v800, %v792
    %v804 = vsel %vm802, %v801, %v794
    %v805 = vmax.f32 %v803, 0.0
    %v806 = vmax.f32 %v804, 0.0
    %v807 = vld [vmem:[%s5] sm:$0xff]
    %v808 = vld [vmem:[%s5 + $0x8] sm:$0xff]
    %v809 = vld [vmem:[%s5 + $0x10] sm:$0xff]
    %v810 = vld [vmem:[%s5 + $0x18] sm:$0xff]
    %v811 = vld [vmem:[%s5 + $0x20] sm:$0xff]
    %v812 = vld [vmem:[%s5 + $0x28] sm:$0xff]
    %v813 = vld [vmem:[%s5 + $0x30] sm:$0xff]
    %v814 = vld [vmem:[%s5 + $0x38] sm:$0xff]
    %vm815 = vcmask 523264
    %v817 = vsel %vm815, %v805, 0
    %v820 = vsel %vm815, %v806, 0
    %822 = vmatprep.subr.mxu0 0.0
    %823 = vmatpush1.msra.mxu0 %v807
    %824 = vmatprep.subr.mxu0 0.0
    %825 = vmatpush1.msra.mxu0 %v808
    %826 = vmatprep.subr.mxu0 0.0
    %827 = vmatpush1.msra.mxu0 %v809
    %828 = vmatprep.subr.mxu0 0.0
    %829 = vmatpush1.msra.mxu0 %v810
    %830 = vmatprep.subr.mxu0 0.0
    %831 = vmatpush1.msra.mxu0 %v811
    %832 = vmatprep.subr.mxu0 0.0
    %833 = vmatpush1.msra.mxu0 %v812
    %834 = vmatprep.subr.mxu0 0.0
    %835 = vmatpush1.msra.mxu0 %v813
    %836 = vmatprep.subr.mxu0 0.0
    %837 = vmatpush1.msra.mxu0 %v814
    %838 = vmatprep.subr.mxu0 0.0
    %839 = vmatpush1.msra.mxu0 0.0
    %840 = vmatprep.subr.mxu0 0.0
    %841 = vmatpush1.msra.mxu0 0.0
    %842 = vmatprep.subr.mxu0 0.0
    %843 = vmatpush1.msra.mxu0 0.0
    %844 = vmatprep.subr.mxu0 0.0
    %845 = vmatpush1.msra.mxu0 0.0
    %846 = vmatprep.subr.mxu0 0.0
    %847 = vmatpush1.msra.mxu0 0.0
    %848 = vmatprep.subr.mxu0 0.0
    %849 = vmatpush1.msra.mxu0 0.0
    %850 = vmatprep.subr.mxu0 0.0
    %851 = vmatpush1.msra.mxu0 0.0
    %852 = vmatprep.subr.mxu0 0.0
    %853 = vmatpush1.msra.mxu0 0.0
    %854 = vmatprep.subr.mxu0 0.0
    %855 = vmatpush1.msra.mxu0 0.0
    %856 = vmatprep.subr.mxu0 0.0
    %857 = vmatpush1.msra.mxu0 0.0
    %858 = vmatprep.subr.mxu0 0.0
    %859 = vmatpush1.msra.mxu0 0.0
    %860 = vmatprep.subr.mxu0 0.0
    %861 = vmatpush1.msra.mxu0 0.0
    %862 = vmatprep.subr.mxu0 0.0
    %863 = vmatpush1.msra.mxu0 0.0
    %864 = vmatprep.subr.mxu0 0.0
    %865 = vmatpush1.msra.mxu0 0.0
    %866 = vmatprep.subr.mxu0 0.0
    %867 = vmatpush1.msra.mxu0 0.0
    %868 = vmatprep.subr.mxu0 0.0
    %869 = vmatpush1.msra.mxu0 0.0
    %870 = vmatprep.subr.mxu0 0.0
    %871 = vmatpush1.msra.mxu0 0.0
    %872 = vmatprep.subr.mxu0 0.0
    %873 = vmatpush1.msra.mxu0 0.0
    %874 = vmatprep.subr.mxu0 0.0
    %875 = vmatpush1.msra.mxu0 0.0
    %876 = vmatprep.subr.mxu0 0.0
    %877 = vmatpush1.msra.mxu0 0.0
    %878 = vmatprep.subr.mxu0 0.0
    %879 = vmatpush1.msra.mxu0 0.0
    %880 = vmatprep.subr.mxu0 0.0
    %881 = vmatpush1.msra.mxu0 0.0
    %882 = vmatprep.subr.mxu0 0.0
    %883 = vmatpush1.msra.mxu0 0.0
    %884 = vmatprep.subr.mxu0 0.0
    %885 = vmatpush1.msra.mxu0 0.0
    %886 = vmatprep.mubr.f32.mxu0 0.0
    %887 = vmatmul.mubr.f32.gmra.mrb[0].mxu0 %v817
    %v888 = vpop.f32.mrb[0].mxu0
    %v889 = vadd.f32 0.0, %v888
    %v890 = vpop.f32.mrb[0].mxu0
    %891 = vmatprep.mubr.f32.mxu0 0.0
    %892 = vmatmul.mubr.f32.gmra.mrb[0].mxu0 %v820
    %v893 = vpop.f32.mrb[0].mxu0
    %v894 = vadd.f32 0.0, %v893
    %v895 = vpop.f32.mrb[0].mxu0
    %896 = vdwg.mxu0
    %897 = vxpose.xlu0.b32.start [1/16] %v889, 128
    %898 = vxpose.xlu0.b32.cont [2/16] %v894, 128
    %899 = vxpose.xlu0.b32.cont [3/16] 0.0, 128
    %900 = vxpose.xlu0.b32.cont [4/16] 0.0, 128
    %901 = vxpose.xlu0.b32.cont [5/16] 0.0, 128
    %902 = vxpose.xlu0.b32.cont [6/16] 0.0, 128
    %903 = vxpose.xlu0.b32.cont [7/16] 0.0, 128
    %904 = vxpose.xlu0.b32.cont [8/16] 0.0, 128
    %905 = vxpose.xlu0.b32.cont [9/16] 0.0, 128
    %906 = vxpose.xlu0.b32.cont [10/16] 0.0, 128
    %907 = vxpose.xlu0.b32.cont [11/16] 0.0, 128
    %908 = vxpose.xlu0.b32.cont [12/16] 0.0, 128
    %909 = vxpose.xlu0.b32.cont [13/16] 0.0, 128
    %910 = vxpose.xlu0.b32.cont [14/16] 0.0, 128
    %911 = vxpose.xlu0.b32.cont [15/16] 0.0, 128
    %912 = vxpose.xlu0.b32.end [16/16] 0.0, 128
    %v913 = vpop.trf.xlu0
    %v914 = vpop.trf.xlu0
    %v915 = vpop.trf.xlu0
    %v916 = vpop.trf.xlu0
    %v917 = vpop.trf.xlu0
    %v918 = vpop.trf.xlu0
    %v919 = vpop.trf.xlu0
    %v920 = vpop.trf.xlu0
    %v921 = vpop.trf.xlu0
    %v922 = vpop.trf.xlu0
    %v923 = vpop.trf.xlu0
    %v924 = vpop.trf.xlu0
    %v925 = vpop.trf.xlu0
    %v926 = vpop.trf.xlu0
    %v927 = vpop.trf.xlu0
    %v928 = vpop.trf.xlu0
    %s929 = sld [smem:[#allocation2 + $0xc]]
    %s930 = sld [smem:[#allocation2 + $0x10]]
    %s931 = sld [smem:[#allocation2 + $0x14]]
    %v932 = vstv %s929
    %v933 = vmul.f32 %v43, %v932
    %v934 = vmul.f32 %v44, %v932
    %v935 = vlaneseq
    %v936 = vshrl.u32 %v935, 7
    %v937 = vsub.s32 0, %v936
    %v938 = vrot.slane %v913, %v937
    %v939 = vadd.f32 %v933, %v938
    %v940 = vadd.f32 %v934, %v938
    %v941 = vstv %s931
    %v942 = vadd.f32 %v889, %v941
    %v943 = vadd.f32 %v894, %v941
    %945 = vset.pattern.permute.xlu0 4
    %946 = vperm.xlu0 %945, %v942
    %v947 = vpop.permute.xlu0 %946
    %950 = vset.pattern.permute.xlu0 4
    %951 = vperm.xlu0 %950, %v943
    %v952 = vpop.permute.xlu0 %951
    %v954 = vadd.f32 %v939, %v947
    %v955 = vadd.f32 %v940, %v952
    %vm956 = vcmp.gt.f32.partialorder %v954, 0.0
    %vm957 = vcmp.gt.f32.partialorder %v955, 0.0
    %v958 = vmul.f32 %v954, 0.01
    %v959 = vmul.f32 %v955, 0.01
    %v960 = vsel %vm956, %v954, %v958
    %v961 = vsel %vm957, %v955, %v959
    %v962 = vstv %s930
    %v963 = vmul.f32 %v960, %v962
    %v964 = vmul.f32 %v961, %v962
    %v965 = vsel %vm47, %v963, -1e+30
    %v966 = vsel %vm48, %v964, -1e+30
    %s967 = sld [smem:[#allocation2 + $0xd]]
    %s968 = sld [smem:[#allocation2 + $0x11]]
    %s969 = sld [smem:[#allocation2 + $0x15]]
    %v970 = vstv %s967
    %v971 = vmul.f32 %v43, %v970
    %v972 = vmul.f32 %v44, %v970
    %v973 = vlaneseq
    %v974 = vshrl.u32 %v973, 7
    %v975 = vsub.s32 1, %v974
    %v976 = vrot.slane %v913, %v975
    %v977 = vadd.f32 %v971, %v976
    %v978 = vadd.f32 %v972, %v976
    %v979 = vstv %s969
    %v980 = vadd.f32 %v889, %v979
    %v981 = vadd.f32 %v894, %v979
    %983 = vset.pattern.permute.xlu0 5
    %984 = vperm.xlu0 %983, %v980
    %v985 = vpop.permute.xlu0 %984
    %988 = vset.pattern.permute.xlu0 5
    %989 = vperm.xlu0 %988, %v981
    %v990 = vpop.permute.xlu0 %989
    %v992 = vadd.f32 %v977, %v985
    %v993 = vadd.f32 %v978, %v990
    %vm994 = vcmp.gt.f32.partialorder %v992, 0.0
    %vm995 = vcmp.gt.f32.partialorder %v993, 0.0
    %v996 = vmul.f32 %v992, 0.01
    %v997 = vmul.f32 %v993, 0.01
    %v998 = vsel %vm994, %v992, %v996
    %v999 = vsel %vm995, %v993, %v997
    %v1000 = vstv %s968
    %v1001 = vmul.f32 %v998, %v1000
    %v1002 = vmul.f32 %v999, %v1000
    %v1003 = vsel %vm47, %v1001, -1e+30
    %v1004 = vsel %vm48, %v1002, -1e+30
    %s1005 = sld [smem:[#allocation2 + $0xe]]
    %s1006 = sld [smem:[#allocation2 + $0x12]]
    %s1007 = sld [smem:[#allocation2 + $0x16]]
    %v1008 = vstv %s1005
    %v1009 = vmul.f32 %v43, %v1008
    %v1010 = vmul.f32 %v44, %v1008
    %v1011 = vlaneseq
    %v1012 = vshrl.u32 %v1011, 7
    %v1013 = vsub.s32 2, %v1012
    %v1014 = vrot.slane %v913, %v1013
    %v1015 = vadd.f32 %v1009, %v1014
    %v1016 = vadd.f32 %v1010, %v1014
    %v1017 = vstv %s1007
    %v1018 = vadd.f32 %v889, %v1017
    %v1019 = vadd.f32 %v894, %v1017
    %1021 = vset.pattern.permute.xlu0 6
    %1022 = vperm.xlu0 %1021, %v1018
    %v1023 = vpop.permute.xlu0 %1022
    %1026 = vset.pattern.permute.xlu0 6
    %1027 = vperm.xlu0 %1026, %v1019
    %v1028 = vpop.permute.xlu0 %1027
    %v1030 = vadd.f32 %v1015, %v1023
    %v1031 = vadd.f32 %v1016, %v1028
    %vm1032 = vcmp.gt.f32.partialorder %v1030, 0.0
    %vm1033 = vcmp.gt.f32.partialorder %v1031, 0.0
    %v1034 = vmul.f32 %v1030, 0.01
    %v1035 = vmul.f32 %v1031, 0.01
    %v1036 = vsel %vm1032, %v1030, %v1034
    %v1037 = vsel %vm1033, %v1031, %v1035
    %v1038 = vstv %s1006
    %v1039 = vmul.f32 %v1036, %v1038
    %v1040 = vmul.f32 %v1037, %v1038
    %v1041 = vsel %vm47, %v1039, -1e+30
    %v1042 = vsel %vm48, %v1040, -1e+30
    %s1043 = sld [smem:[#allocation2 + $0xf]]
    %s1044 = sld [smem:[#allocation2 + $0x13]]
    %s1045 = sld [smem:[#allocation2 + $0x17]]
    %v1046 = vstv %s1043
    %v1047 = vmul.f32 %v43, %v1046
    %v1048 = vmul.f32 %v44, %v1046
    %v1049 = vlaneseq
    %v1050 = vshrl.u32 %v1049, 7
    %v1051 = vsub.s32 3, %v1050
    %v1052 = vrot.slane %v913, %v1051
    %v1053 = vadd.f32 %v1047, %v1052
    %v1054 = vadd.f32 %v1048, %v1052
    %v1055 = vstv %s1045
    %v1056 = vadd.f32 %v889, %v1055
    %v1057 = vadd.f32 %v894, %v1055
    %1059 = vset.pattern.permute.xlu0 7
    %1060 = vperm.xlu0 %1059, %v1056
    %v1061 = vpop.permute.xlu0 %1060
    %1064 = vset.pattern.permute.xlu0 7
    %1065 = vperm.xlu0 %1064, %v1057
    %v1066 = vpop.permute.xlu0 %1065
    %v1068 = vadd.f32 %v1053, %v1061
    %v1069 = vadd.f32 %v1054, %v1066
    %vm1070 = vcmp.gt.f32.partialorder %v1068, 0.0
    %vm1071 = vcmp.gt.f32.partialorder %v1069, 0.0
    %v1072 = vmul.f32 %v1068, 0.01
    %v1073 = vmul.f32 %v1069, 0.01
    %v1074 = vsel %vm1070, %v1068, %v1072
    %v1075 = vsel %vm1071, %v1069, %v1073
    %v1076 = vstv %s1044
    %v1077 = vmul.f32 %v1074, %v1076
    %v1078 = vmul.f32 %v1075, %v1076
    %v1079 = vsel %vm47, %v1077, -1e+30
    %v1080 = vsel %vm48, %v1078, -1e+30
    %v1081 = vsel %vm318, %v965, -inf
    %1082 = vmax.xlane.f32.xlu0 %v1081
    %v1083 = vpop.xlane.xlu0 %1082
    %v1084 = vsel %vm318, %v966, -inf
    %1085 = vmax.xlane.f32.xlu0 %v1084
    %v1086 = vpop.xlane.xlu0 %1085
    %v1087 = vsel %vm318, %v1003, -inf
    %1088 = vmax.xlane.f32.xlu0 %v1087
    %v1089 = vpop.xlane.xlu0 %1088
    %v1090 = vsel %vm318, %v1004, -inf
    %1091 = vmax.xlane.f32.xlu0 %v1090
    %v1092 = vpop.xlane.xlu0 %1091
    %v1093 = vsel %vm318, %v1041, -inf
    %1094 = vmax.xlane.f32.xlu0 %v1093
    %v1095 = vpop.xlane.xlu0 %1094
    %v1096 = vsel %vm318, %v1042, -inf
    %1097 = vmax.xlane.f32.xlu0 %v1096
    %v1098 = vpop.xlane.xlu0 %1097
    %v1099 = vsel %vm318, %v1079, -inf
    %1100 = vmax.xlane.f32.xlu0 %v1099
    %v1101 = vpop.xlane.xlu0 %1100
    %v1102 = vsel %vm318, %v1080, -inf
    %1103 = vmax.xlane.f32.xlu0 %v1102
    %v1104 = vpop.xlane.xlu0 %1103
    %v1105 = vsub.f32 %v965, %v1083
    %v1106 = vsub.f32 %v966, %v1086
    %v1107 = vsub.f32 %v1003, %v1089
    %v1108 = vsub.f32 %v1004, %v1092
    %v1109 = vsub.f32 %v1041, %v1095
    %v1110 = vsub.f32 %v1042, %v1098
    %v1111 = vsub.f32 %v1079, %v1101
    %v1112 = vsub.f32 %v1080, %v1104
    %v1113 = vmul.f32 %v1105, 1.442695
    %v1114 = vpow.pop %v1113
    %v1115 = vmul.f32 %v1106, 1.442695
    %v1116 = vpow.pop %v1115
    %v1117 = vmul.f32 %v1107, 1.442695
    %v1118 = vpow.pop %v1117
    %v1119 = vmul.f32 %v1108, 1.442695
    %v1120 = vpow.pop %v1119
    %v1121 = vmul.f32 %v1109, 1.442695
    %v1122 = vpow.pop %v1121
    %v1123 = vmul.f32 %v1110, 1.442695
    %v1124 = vpow.pop %v1123
    %v1125 = vmul.f32 %v1111, 1.442695
    %v1126 = vpow.pop %v1125
    %v1127 = vmul.f32 %v1112, 1.442695
    %v1128 = vpow.pop %v1127
    %v1129 = vmul.f32 %v1114, %v45
    %v1130 = vmul.f32 %v1116, %v46
    %v1131 = vmul.f32 %v1118, %v45
    %v1132 = vmul.f32 %v1120, %v46
    %v1133 = vmul.f32 %v1122, %v45
    %v1134 = vmul.f32 %v1124, %v46
    %v1135 = vmul.f32 %v1126, %v45
    %v1136 = vmul.f32 %v1128, %v46
    %v1137 = vsel %vm318, %v1129, 0.0
    %1138 = vadd.xlane.f32.xlu0 %v1137
    %v1139 = vpop.xlane.xlu0 %1138
    %v1140 = vsel %vm318, %v1130, 0.0
    %1141 = vadd.xlane.f32.xlu0 %v1140
    %v1142 = vpop.xlane.xlu0 %1141
    %v1143 = vsel %vm318, %v1131, 0.0
    %1144 = vadd.xlane.f32.xlu0 %v1143
    %v1145 = vpop.xlane.xlu0 %1144
    %v1146 = vsel %vm318, %v1132, 0.0
    %1147 = vadd.xlane.f32.xlu0 %v1146
    %v1148 = vpop.xlane.xlu0 %1147
    %v1149 = vsel %vm318, %v1133, 0.0
    %1150 = vadd.xlane.f32.xlu0 %v1149
    %v1151 = vpop.xlane.xlu0 %1150
    %v1152 = vsel %vm318, %v1134, 0.0
    %1153 = vadd.xlane.f32.xlu0 %v1152
    %v1154 = vpop.xlane.xlu0 %1153
    %v1155 = vsel %vm318, %v1135, 0.0
    %1156 = vadd.xlane.f32.xlu0 %v1155
    %v1157 = vpop.xlane.xlu0 %1156
    %v1158 = vsel %vm318, %v1136, 0.0
    %1159 = vadd.xlane.f32.xlu0 %v1158
    %v1160 = vpop.xlane.xlu0 %1159
    %v1161 = vmax.f32 %v1139, 1e-20
    %v1162 = vmax.f32 %v1142, 1e-20
    %v1163 = vmax.f32 %v1145, 1e-20
    %v1164 = vmax.f32 %v1148, 1e-20
    %v1165 = vmax.f32 %v1151, 1e-20
    %v1166 = vmax.f32 %v1154, 1e-20
    %v1167 = vmax.f32 %v1157, 1e-20
    %v1168 = vmax.f32 %v1160, 1e-20
    %v1169 = vrcp.pop %v1161
    %v1170 = vrcp.pop %v1162
    %v1171 = vrcp.pop %v1163
    %v1172 = vrcp.pop %v1164
    %v1173 = vrcp.pop %v1165
    %v1174 = vrcp.pop %v1166
    %v1175 = vrcp.pop %v1167
    %v1176 = vrcp.pop %v1168
    %v1177 = vmul.f32 %v1129, %v1169
    %v1178 = vmul.f32 %v1130, %v1170
    %v1179 = vmul.f32 %v1131, %v1171
    %v1180 = vmul.f32 %v1132, %v1172
    %v1181 = vmul.f32 %v1133, %v1173
    %v1182 = vmul.f32 %v1134, %v1174
    %v1183 = vmul.f32 %v1135, %v1175
    %v1184 = vmul.f32 %v1136, %v1176
    %1187 = vrot.lane.b32.xlu0 %v889, 120
    %v1188 = vpop.permute.xlu0 %1187
    %1189 = vrot.lane.b32.xlu0 %v894, 120
    %v1190 = vpop.permute.xlu0 %1189
    %v1194 = vsel %vm318, %v1177, 0
    %v1197 = vsel %vm318, %v1178, 0
    %1199 = vmatprep.subr.mxu0 0.0
    %1200 = vmatpush1.msra.mxu0 %v1188
    %1201 = vmatprep.subr.mxu0 0.0
    %1202 = vmatpush1.msra.mxu0 %v1190
    %1203 = vmatprep.subr.mxu0 0.0
    %1204 = vmatpush1.msra.mxu0 0.0
    %1205 = vmatprep.subr.mxu0 0.0
    %1206 = vmatpush1.msra.mxu0 0.0
    %1207 = vmatprep.subr.mxu0 0.0
    %1208 = vmatpush1.msra.mxu0 0.0
    %1209 = vmatprep.subr.mxu0 0.0
    %1210 = vmatpush1.msra.mxu0 0.0
    %1211 = vmatprep.subr.mxu0 0.0
    %1212 = vmatpush1.msra.mxu0 0.0
    %1213 = vmatprep.subr.mxu0 0.0
    %1214 = vmatpush1.msra.mxu0 0.0
    %1215 = vmatprep.subr.mxu0 0.0
    %1216 = vmatpush1.msra.mxu0 0.0
    %1217 = vmatprep.subr.mxu0 0.0
    %1218 = vmatpush1.msra.mxu0 0.0
    %1219 = vmatprep.subr.mxu0 0.0
    %1220 = vmatpush1.msra.mxu0 0.0
    %1221 = vmatprep.subr.mxu0 0.0
    %1222 = vmatpush1.msra.mxu0 0.0
    %1223 = vmatprep.subr.mxu0 0.0
    %1224 = vmatpush1.msra.mxu0 0.0
    %1225 = vmatprep.subr.mxu0 0.0
    %1226 = vmatpush1.msra.mxu0 0.0
    %1227 = vmatprep.subr.mxu0 0.0
    %1228 = vmatpush1.msra.mxu0 0.0
    %1229 = vmatprep.subr.mxu0 0.0
    %1230 = vmatpush1.msra.mxu0 0.0
    %1231 = vmatprep.subr.mxu0 0.0
    %1232 = vmatpush1.msra.mxu0 0.0
    %1233 = vmatprep.subr.mxu0 0.0
    %1234 = vmatpush1.msra.mxu0 0.0
    %1235 = vmatprep.subr.mxu0 0.0
    %1236 = vmatpush1.msra.mxu0 0.0
    %1237 = vmatprep.subr.mxu0 0.0
    %1238 = vmatpush1.msra.mxu0 0.0
    %1239 = vmatprep.subr.mxu0 0.0
    %1240 = vmatpush1.msra.mxu0 0.0
    %1241 = vmatprep.subr.mxu0 0.0
    %1242 = vmatpush1.msra.mxu0 0.0
    %1243 = vmatprep.subr.mxu0 0.0
    %1244 = vmatpush1.msra.mxu0 0.0
    %1245 = vmatprep.subr.mxu0 0.0
    %1246 = vmatpush1.msra.mxu0 0.0
    %1247 = vmatprep.subr.mxu0 0.0
    %1248 = vmatpush1.msra.mxu0 0.0
    %1249 = vmatprep.subr.mxu0 0.0
    %1250 = vmatpush1.msra.mxu0 0.0
    %1251 = vmatprep.subr.mxu0 0.0
    %1252 = vmatpush1.msra.mxu0 0.0
    %1253 = vmatprep.subr.mxu0 0.0
    %1254 = vmatpush1.msra.mxu0 0.0
    %1255 = vmatprep.subr.mxu0 0.0
    %1256 = vmatpush1.msra.mxu0 0.0
    %1257 = vmatprep.subr.mxu0 0.0
    %1258 = vmatpush1.msra.mxu0 0.0
    %1259 = vmatprep.subr.mxu0 0.0
    %1260 = vmatpush1.msra.mxu0 0.0
    %1261 = vmatprep.subr.mxu0 0.0
    %1262 = vmatpush1.msra.mxu0 0.0
    %1263 = vmatprep.mubr.f32.mxu0 0.0
    %1264 = vmatmul.mubr.f32.gmra.mrb[0].mxu0 %v1194
    %v1265 = vpop.f32.mrb[0].mxu0
    %v1266 = vadd.f32 0.0, %v1265
    %v1267 = vpop.f32.mrb[0].mxu0
    %1268 = vmatprep.mubr.f32.mxu0 0.0
    %1269 = vmatmul.mubr.f32.gmra.mrb[0].mxu0 %v1197
    %v1270 = vpop.f32.mrb[0].mxu0
    %v1271 = vadd.f32 0.0, %v1270
    %v1272 = vpop.f32.mrb[0].mxu0
    %1273 = vdwg.mxu0
    %1274 = vrot.lane.b32.xlu0 %v889, 112
    %v1275 = vpop.permute.xlu0 %1274
    %1276 = vrot.lane.b32.xlu0 %v894, 112
    %v1277 = vpop.permute.xlu0 %1276
    %v1281 = vsel %vm318, %v1179, 0
    %v1284 = vsel %vm318, %v1180, 0
    %1286 = vmatprep.subr.mxu0 0.0
    %1287 = vmatpush1.msra.mxu0 %v1275
    %1288 = vmatprep.subr.mxu0 0.0
    %1289 = vmatpush1.msra.mxu0 %v1277
    %1290 = vmatprep.subr.mxu0 0.0
    %1291 = vmatpush1.msra.mxu0 0.0
    %1292 = vmatprep.subr.mxu0 0.0
    %1293 = vmatpush1.msra.mxu0 0.0
    %1294 = vmatprep.subr.mxu0 0.0
    %1295 = vmatpush1.msra.mxu0 0.0
    %1296 = vmatprep.subr.mxu0 0.0
    %1297 = vmatpush1.msra.mxu0 0.0
    %1298 = vmatprep.subr.mxu0 0.0
    %1299 = vmatpush1.msra.mxu0 0.0
    %1300 = vmatprep.subr.mxu0 0.0
    %1301 = vmatpush1.msra.mxu0 0.0
    %1302 = vmatprep.subr.mxu0 0.0
    %1303 = vmatpush1.msra.mxu0 0.0
    %1304 = vmatprep.subr.mxu0 0.0
    %1305 = vmatpush1.msra.mxu0 0.0
    %1306 = vmatprep.subr.mxu0 0.0
    %1307 = vmatpush1.msra.mxu0 0.0
    %1308 = vmatprep.subr.mxu0 0.0
    %1309 = vmatpush1.msra.mxu0 0.0
    %1310 = vmatprep.subr.mxu0 0.0
    %1311 = vmatpush1.msra.mxu0 0.0
    %1312 = vmatprep.subr.mxu0 0.0
    %1313 = vmatpush1.msra.mxu0 0.0
    %1314 = vmatprep.subr.mxu0 0.0
    %1315 = vmatpush1.msra.mxu0 0.0
    %1316 = vmatprep.subr.mxu0 0.0
    %1317 = vmatpush1.msra.mxu0 0.0
    %1318 = vmatprep.subr.mxu0 0.0
    %1319 = vmatpush1.msra.mxu0 0.0
    %1320 = vmatprep.subr.mxu0 0.0
    %1321 = vmatpush1.msra.mxu0 0.0
    %1322 = vmatprep.subr.mxu0 0.0
    %1323 = vmatpush1.msra.mxu0 0.0
    %1324 = vmatprep.subr.mxu0 0.0
    %1325 = vmatpush1.msra.mxu0 0.0
    %1326 = vmatprep.subr.mxu0 0.0
    %1327 = vmatpush1.msra.mxu0 0.0
    %1328 = vmatprep.subr.mxu0 0.0
    %1329 = vmatpush1.msra.mxu0 0.0
    %1330 = vmatprep.subr.mxu0 0.0
    %1331 = vmatpush1.msra.mxu0 0.0
    %1332 = vmatprep.subr.mxu0 0.0
    %1333 = vmatpush1.msra.mxu0 0.0
    %1334 = vmatprep.subr.mxu0 0.0
    %1335 = vmatpush1.msra.mxu0 0.0
    %1336 = vmatprep.subr.mxu0 0.0
    %1337 = vmatpush1.msra.mxu0 0.0
    %1338 = vmatprep.subr.mxu0 0.0
    %1339 = vmatpush1.msra.mxu0 0.0
    %1340 = vmatprep.subr.mxu0 0.0
    %1341 = vmatpush1.msra.mxu0 0.0
    %1342 = vmatprep.subr.mxu0 0.0
    %1343 = vmatpush1.msra.mxu0 0.0
    %1344 = vmatprep.subr.mxu0 0.0
    %1345 = vmatpush1.msra.mxu0 0.0
    %1346 = vmatprep.subr.mxu0 0.0
    %1347 = vmatpush1.msra.mxu0 0.0
    %1348 = vmatprep.subr.mxu0 0.0
    %1349 = vmatpush1.msra.mxu0 0.0
    %1350 = vmatprep.mubr.f32.mxu0 0.0
    %1351 = vmatmul.mubr.f32.gmra.mrb[0].mxu0 %v1281
    %v1352 = vpop.f32.mrb[0].mxu0
    %v1353 = vadd.f32 0.0, %v1352
    %v1354 = vpop.f32.mrb[0].mxu0
    %1355 = vmatprep.mubr.f32.mxu0 0.0
    %1356 = vmatmul.mubr.f32.gmra.mrb[0].mxu0 %v1284
    %v1357 = vpop.f32.mrb[0].mxu0
    %v1358 = vadd.f32 0.0, %v1357
    %v1359 = vpop.f32.mrb[0].mxu0
    %1360 = vdwg.mxu0
    %1361 = vrot.lane.b32.xlu0 %v889, 104
    %v1362 = vpop.permute.xlu0 %1361
    %1363 = vrot.lane.b32.xlu0 %v894, 104
    %v1364 = vpop.permute.xlu0 %1363
    %v1368 = vsel %vm318, %v1181, 0
    %v1371 = vsel %vm318, %v1182, 0
    %1373 = vmatprep.subr.mxu0 0.0
    %1374 = vmatpush1.msra.mxu0 %v1362
    %1375 = vmatprep.subr.mxu0 0.0
    %1376 = vmatpush1.msra.mxu0 %v1364
    %1377 = vmatprep.subr.mxu0 0.0
    %1378 = vmatpush1.msra.mxu0 0.0
    %1379 = vmatprep.subr.mxu0 0.0
    %1380 = vmatpush1.msra.mxu0 0.0
    %1381 = vmatprep.subr.mxu0 0.0
    %1382 = vmatpush1.msra.mxu0 0.0
    %1383 = vmatprep.subr.mxu0 0.0
    %1384 = vmatpush1.msra.mxu0 0.0
    %1385 = vmatprep.subr.mxu0 0.0
    %1386 = vmatpush1.msra.mxu0 0.0
    %1387 = vmatprep.subr.mxu0 0.0
    %1388 = vmatpush1.msra.mxu0 0.0
    %1389 = vmatprep.subr.mxu0 0.0
    %1390 = vmatpush1.msra.mxu0 0.0
    %1391 = vmatprep.subr.mxu0 0.0
    %1392 = vmatpush1.msra.mxu0 0.0
    %1393 = vmatprep.subr.mxu0 0.0
    %1394 = vmatpush1.msra.mxu0 0.0
    %1395 = vmatprep.subr.mxu0 0.0
    %1396 = vmatpush1.msra.mxu0 0.0
    %1397 = vmatprep.subr.mxu0 0.0
    %1398 = vmatpush1.msra.mxu0 0.0
    %1399 = vmatprep.subr.mxu0 0.0
    %1400 = vmatpush1.msra.mxu0 0.0
    %1401 = vmatprep.subr.mxu0 0.0
    %1402 = vmatpush1.msra.mxu0 0.0
    %1403 = vmatprep.subr.mxu0 0.0
    %1404 = vmatpush1.msra.mxu0 0.0
    %1405 = vmatprep.subr.mxu0 0.0
    %1406 = vmatpush1.msra.mxu0 0.0
    %1407 = vmatprep.subr.mxu0 0.0
    %1408 = vmatpush1.msra.mxu0 0.0
    %1409 = vmatprep.subr.mxu0 0.0
    %1410 = vmatpush1.msra.mxu0 0.0
    %1411 = vmatprep.subr.mxu0 0.0
    %1412 = vmatpush1.msra.mxu0 0.0
    %1413 = vmatprep.subr.mxu0 0.0
    %1414 = vmatpush1.msra.mxu0 0.0
    %1415 = vmatprep.subr.mxu0 0.0
    %1416 = vmatpush1.msra.mxu0 0.0
    %1417 = vmatprep.subr.mxu0 0.0
    %1418 = vmatpush1.msra.mxu0 0.0
    %1419 = vmatprep.subr.mxu0 0.0
    %1420 = vmatpush1.msra.mxu0 0.0
    %1421 = vmatprep.subr.mxu0 0.0
    %1422 = vmatpush1.msra.mxu0 0.0
    %1423 = vmatprep.subr.mxu0 0.0
    %1424 = vmatpush1.msra.mxu0 0.0
    %1425 = vmatprep.subr.mxu0 0.0
    %1426 = vmatpush1.msra.mxu0 0.0
    %1427 = vmatprep.subr.mxu0 0.0
    %1428 = vmatpush1.msra.mxu0 0.0
    %1429 = vmatprep.subr.mxu0 0.0
    %1430 = vmatpush1.msra.mxu0 0.0
    %1431 = vmatprep.subr.mxu0 0.0
    %1432 = vmatpush1.msra.mxu0 0.0
    %1433 = vmatprep.subr.mxu0 0.0
    %1434 = vmatpush1.msra.mxu0 0.0
    %1435 = vmatprep.subr.mxu0 0.0
    %1436 = vmatpush1.msra.mxu0 0.0
    %1437 = vmatprep.mubr.f32.mxu0 0.0
    %1438 = vmatmul.mubr.f32.gmra.mrb[0].mxu0 %v1368
    %v1439 = vpop.f32.mrb[0].mxu0
    %v1440 = vadd.f32 0.0, %v1439
    %v1441 = vpop.f32.mrb[0].mxu0
    %1442 = vmatprep.mubr.f32.mxu0 0.0
    %1443 = vmatmul.mubr.f32.gmra.mrb[0].mxu0 %v1371
    %v1444 = vpop.f32.mrb[0].mxu0
    %v1445 = vadd.f32 0.0, %v1444
    %v1446 = vpop.f32.mrb[0].mxu0
    %1447 = vdwg.mxu0
    %1448 = vrot.lane.b32.xlu0 %v889, 96
    %v1449 = vpop.permute.xlu0 %1448
    %1450 = vrot.lane.b32.xlu0 %v894, 96
    %v1451 = vpop.permute.xlu0 %1450
    %v1455 = vsel %vm318, %v1183, 0
    %v1458 = vsel %vm318, %v1184, 0
    %1460 = vmatprep.subr.mxu0 0.0
    %1461 = vmatpush1.msra.mxu0 %v1449
    %1462 = vmatprep.subr.mxu0 0.0
    %1463 = vmatpush1.msra.mxu0 %v1451
    %1464 = vmatprep.subr.mxu0 0.0
    %1465 = vmatpush1.msra.mxu0 0.0
    %1466 = vmatprep.subr.mxu0 0.0
    %1467 = vmatpush1.msra.mxu0 0.0
    %1468 = vmatprep.subr.mxu0 0.0
    %1469 = vmatpush1.msra.mxu0 0.0
    %1470 = vmatprep.subr.mxu0 0.0
    %1471 = vmatpush1.msra.mxu0 0.0
    %1472 = vmatprep.subr.mxu0 0.0
    %1473 = vmatpush1.msra.mxu0 0.0
    %1474 = vmatprep.subr.mxu0 0.0
    %1475 = vmatpush1.msra.mxu0 0.0
    %1476 = vmatprep.subr.mxu0 0.0
    %1477 = vmatpush1.msra.mxu0 0.0
    %1478 = vmatprep.subr.mxu0 0.0
    %1479 = vmatpush1.msra.mxu0 0.0
    %1480 = vmatprep.subr.mxu0 0.0
    %1481 = vmatpush1.msra.mxu0 0.0
    %1482 = vmatprep.subr.mxu0 0.0
    %1483 = vmatpush1.msra.mxu0 0.0
    %1484 = vmatprep.subr.mxu0 0.0
    %1485 = vmatpush1.msra.mxu0 0.0
    %1486 = vmatprep.subr.mxu0 0.0
    %1487 = vmatpush1.msra.mxu0 0.0
    %1488 = vmatprep.subr.mxu0 0.0
    %1489 = vmatpush1.msra.mxu0 0.0
    %1490 = vmatprep.subr.mxu0 0.0
    %1491 = vmatpush1.msra.mxu0 0.0
    %1492 = vmatprep.subr.mxu0 0.0
    %1493 = vmatpush1.msra.mxu0 0.0
    %1494 = vmatprep.subr.mxu0 0.0
    %1495 = vmatpush1.msra.mxu0 0.0
    %1496 = vmatprep.subr.mxu0 0.0
    %1497 = vmatpush1.msra.mxu0 0.0
    %1498 = vmatprep.subr.mxu0 0.0
    %1499 = vmatpush1.msra.mxu0 0.0
    %1500 = vmatprep.subr.mxu0 0.0
    %1501 = vmatpush1.msra.mxu0 0.0
    %1502 = vmatprep.subr.mxu0 0.0
    %1503 = vmatpush1.msra.mxu0 0.0
    %1504 = vmatprep.subr.mxu0 0.0
    %1505 = vmatpush1.msra.mxu0 0.0
    %1506 = vmatprep.subr.mxu0 0.0
    %1507 = vmatpush1.msra.mxu0 0.0
    %1508 = vmatprep.subr.mxu0 0.0
    %1509 = vmatpush1.msra.mxu0 0.0
    %1510 = vmatprep.subr.mxu0 0.0
    %1511 = vmatpush1.msra.mxu0 0.0
    %1512 = vmatprep.subr.mxu0 0.0
    %1513 = vmatpush1.msra.mxu0 0.0
    %1514 = vmatprep.subr.mxu0 0.0
    %1515 = vmatpush1.msra.mxu0 0.0
    %1516 = vmatprep.subr.mxu0 0.0
    %1517 = vmatpush1.msra.mxu0 0.0
    %1518 = vmatprep.subr.mxu0 0.0
    %1519 = vmatpush1.msra.mxu0 0.0
    %1520 = vmatprep.subr.mxu0 0.0
    %1521 = vmatpush1.msra.mxu0 0.0
    %1522 = vmatprep.subr.mxu0 0.0
    %1523 = vmatpush1.msra.mxu0 0.0
    %1524 = vmatprep.mubr.f32.mxu0 0.0
    %1525 = vmatmul.mubr.f32.gmra.mrb[0].mxu0 %v1455
    %v1526 = vpop.f32.mrb[0].mxu0
    %v1527 = vadd.f32 0.0, %v1526
    %v1528 = vpop.f32.mrb[0].mxu0
    %1529 = vmatprep.mubr.f32.mxu0 0.0
    %1530 = vmatmul.mubr.f32.gmra.mrb[0].mxu0 %v1458
    %v1531 = vpop.f32.mrb[0].mxu0
    %v1532 = vadd.f32 0.0, %v1531
    %v1533 = vpop.f32.mrb[0].mxu0
    %1534 = vdwg.mxu0
    %1537 = vrot.lane.b32.xlu0 %v1353, 8
    %v1538 = vpop.permute.xlu0 %1537
    %1539 = vrot.lane.b32.xlu0 %v1358, 8
    %v1540 = vpop.permute.xlu0 %1539
    %1545 = vrot.lane.b32.xlu0 %v1440, 16
    %v1546 = vpop.permute.xlu0 %1545
    %1547 = vrot.lane.b32.xlu0 %v1445, 16
    %v1548 = vpop.permute.xlu0 %1547
    %1553 = vrot.lane.b32.xlu0 %v1527, 24
    %v1554 = vpop.permute.xlu0 %1553
    %1555 = vrot.lane.b32.xlu0 %v1532, 24
    %v1556 = vpop.permute.xlu0 %1555
    %v1559 = vsel %vm52, %v1266, %v1538
    %v1560 = vsel %vm52, %v1271, %v1540
    %v1561 = vsel %vm318, %v1559, %v1546
    %v1562 = vsel %vm318, %v1560, %v1548
    %vm1563 = vcmask 195584
    %v1564 = vsel %vm1563, %v1561, %v1554
    %v1565 = vsel %vm1563, %v1562, %v1556
    %v1566 = vsel %vm799, %v1564, 0.0
    %v1567 = vsel %vm799, %v1565, 0.0
    %v1568 = vadd.f32 %v1566, %v1567
    %v1569 = vrot.slane %v1568, 4
    %v1570 = vadd.f32 %v1568, %v1569
    %v1571 = vrot.slane %v1570, 2
    %v1572 = vadd.f32 %v1570, %v1571
    %v1573 = vrot.slane %v1572, 1
    %v1574 = vadd.f32 %v1572, %v1573
    %v1575 = vld [vmem:[%s6] sm:$0xff]
    %v1576 = vld [vmem:[%s6 + $0x8] sm:$0xff]
    %v1577 = vld [vmem:[%s6 + $0x10] sm:$0xff]
    %v1578 = vld [vmem:[%s6 + $0x18] sm:$0xff]
    %v1579 = vld [vmem:[%s7] sm:$0x1]
    %v1581 = vsel %vm799, %v1574, 0
    %1583 = vmatprep.subr.mxu0 0.0
    %1584 = vmatpush1.msra.mxu0 %v1575
    %1585 = vmatprep.subr.mxu0 0.0
    %1586 = vmatpush1.msra.mxu0 %v1576
    %1587 = vmatprep.subr.mxu0 0.0
    %1588 = vmatpush1.msra.mxu0 %v1577
    %1589 = vmatprep.subr.mxu0 0.0
    %1590 = vmatpush1.msra.mxu0 %v1578
    %1591 = vmatprep.subr.mxu0 0.0
    %1592 = vmatpush1.msra.mxu0 0.0
    %1593 = vmatprep.subr.mxu0 0.0
    %1594 = vmatpush1.msra.mxu0 0.0
    %1595 = vmatprep.subr.mxu0 0.0
    %1596 = vmatpush1.msra.mxu0 0.0
    %1597 = vmatprep.subr.mxu0 0.0
    %1598 = vmatpush1.msra.mxu0 0.0
    %1599 = vmatprep.subr.mxu0 0.0
    %1600 = vmatpush1.msra.mxu0 0.0
    %1601 = vmatprep.subr.mxu0 0.0
    %1602 = vmatpush1.msra.mxu0 0.0
    %1603 = vmatprep.subr.mxu0 0.0
    %1604 = vmatpush1.msra.mxu0 0.0
    %1605 = vmatprep.subr.mxu0 0.0
    %1606 = vmatpush1.msra.mxu0 0.0
    %1607 = vmatprep.subr.mxu0 0.0
    %1608 = vmatpush1.msra.mxu0 0.0
    %1609 = vmatprep.subr.mxu0 0.0
    %1610 = vmatpush1.msra.mxu0 0.0
    %1611 = vmatprep.subr.mxu0 0.0
    %1612 = vmatpush1.msra.mxu0 0.0
    %1613 = vmatprep.subr.mxu0 0.0
    %1614 = vmatpush1.msra.mxu0 0.0
    %1615 = vmatprep.subr.mxu0 0.0
    %1616 = vmatpush1.msra.mxu0 0.0
    %1617 = vmatprep.subr.mxu0 0.0
    %1618 = vmatpush1.msra.mxu0 0.0
    %1619 = vmatprep.subr.mxu0 0.0
    %1620 = vmatpush1.msra.mxu0 0.0
    %1621 = vmatprep.subr.mxu0 0.0
    %1622 = vmatpush1.msra.mxu0 0.0
    %1623 = vmatprep.subr.mxu0 0.0
    %1624 = vmatpush1.msra.mxu0 0.0
    %1625 = vmatprep.subr.mxu0 0.0
    %1626 = vmatpush1.msra.mxu0 0.0
    %1627 = vmatprep.subr.mxu0 0.0
    %1628 = vmatpush1.msra.mxu0 0.0
    %1629 = vmatprep.subr.mxu0 0.0
    %1630 = vmatpush1.msra.mxu0 0.0
    %1631 = vmatprep.subr.mxu0 0.0
    %1632 = vmatpush1.msra.mxu0 0.0
    %1633 = vmatprep.subr.mxu0 0.0
    %1634 = vmatpush1.msra.mxu0 0.0
    %1635 = vmatprep.subr.mxu0 0.0
    %1636 = vmatpush1.msra.mxu0 0.0
    %1637 = vmatprep.subr.mxu0 0.0
    %1638 = vmatpush1.msra.mxu0 0.0
    %1639 = vmatprep.subr.mxu0 0.0
    %1640 = vmatpush1.msra.mxu0 0.0
    %1641 = vmatprep.subr.mxu0 0.0
    %1642 = vmatpush1.msra.mxu0 0.0
    %1643 = vmatprep.subr.mxu0 0.0
    %1644 = vmatpush1.msra.mxu0 0.0
    %1645 = vmatprep.subr.mxu0 0.0
    %1646 = vmatpush1.msra.mxu0 0.0
    %1647 = vmatprep.mubr.f32.mxu0 0.0
    %1648 = vmatmul.mubr.f32.gmra.mrb[0].mxu0 %v1581
    %v1649 = vpop.f32.mrb[0].mxu0
    %v1650 = vadd.f32 %v1579, %v1649
    %v1651 = vpop.f32.mrb[0].mxu0
    %1652 = vdwg.mxu0
    %vm1653 = vcmask 24576
    %1654 = vst.msk [vmem:[#allocation5] sm:$0x1] %vm1653, %v1650
    // Predicated region
    $region38: #{egat_forward.1} parent=1 // pred_check
      _
    $region39: #{egat_forward.1} parent=1 // pred_check_branch
      %1656 = sbr.rel (0) target = $region41
    $region40: #{egat_forward.1} parent=1 // pred_region
      %s1658 = ssub.s32 16, 16
      %1659 = vsyncadd [#allocation3], %s1658
      %s1661 = sshll.u32 [#allocation5], 4
      %s1662 = int_to_ptr.vmem [resolvable:$true] %s1661
      %1664 = dma.vmem_to_hbm [thread:$0]  %s1662, 16, %s8, [#allocation3]
    $region41: #{egat_forward.1} parent=1 // pred_fallthru
      _
    // Predicated region
    $region42: #{egat_forward.1} parent=1 // pred_check
      _
    $region43: #{egat_forward.1} parent=1 // pred_check_branch
      %1666 = sbr.rel (0) target = $region45
    $region44: #{egat_forward.1} parent=1 // pred_region
      %1667 = dma.done [#allocation3], 16
    $region45: #{egat_forward.1} parent=1 // pred_fallthru
      _
    %1668 = vsyncpa [#allocation3], 1
    %1669 = vsyncpa [#allocation4], 1

</llo_original>
